<compile_context>
chip_gen: v7x
topology: tpu7x:2x2x1
jax: 0.10.0
libtpu: 0.0.40
codegen_flags: <defaults>
</compile_context>

<pallas_src>
import functools

import jax
import jax.numpy as jnp
from jax.experimental import pallas as pl
from jax.experimental.pallas import tpu as pltpu

VMEM_LIMIT_BYTES = 32 * 1024 * 1024  # safe on v5e/v6e/v7x


def _round_up(x, m):
    return ((x + m - 1) // m) * m


# ---------------------------------------------------------------------------
# Pallas kernels
# ---------------------------------------------------------------------------
def _xw_kernel(x_ref, w_ref, out_ref):
    """Row-tiled dense matmul: out = X @ W (f32 accumulate, bf16 output)."""
    out_ref[...] = jnp.dot(
        x_ref[...], w_ref[...], preferred_element_type=jnp.float32
    ).astype(out_ref.dtype)


def _aggregate_kernel(a_ref, xw_ref, b_ref, out_ref, acc_ref, *, block_k, apply_relu):
    """out = A_hat @ XW + b (optionally ReLU).  Grid = (row_blocks, k_blocks)."""
    k = pl.program_id(1)

    @pl.when(k == 0)
    def _init():
        acc_ref[...] = jnp.zeros_like(acc_ref)

    start = pl.multiple_of(k * block_k, block_k)
    xw_blk = xw_ref[pl.ds(start, block_k), :]          # resident XW, slice k-chunk
    acc_ref[...] += jnp.dot(a_ref[...], xw_blk, preferred_element_type=jnp.float32)

    @pl.when(k == pl.num_programs(1) - 1)
    def _finalize():
        h = acc_ref[...] + b_ref[...]
        if apply_relu:
            h = jnp.maximum(h, 0.0)
        out_ref[...] = h.astype(out_ref.dtype)


def _aggregate_logsoftmax_kernel(a_ref, xw_ref, b_ref, h_ref, logp_ref, acc_ref,
                                 *, block_k, valid_out):
    """Second layer: out = A_hat @ XW + b, emits raw logits and log_softmax."""
    k = pl.program_id(1)

    @pl.when(k == 0)
    def _init():
        acc_ref[...] = jnp.zeros_like(acc_ref)

    start = pl.multiple_of(k * block_k, block_k)
    xw_blk = xw_ref[pl.ds(start, block_k), :]
    acc_ref[...] += jnp.dot(a_ref[...], xw_blk, preferred_element_type=jnp.float32)

    @pl.when(k == pl.num_programs(1) - 1)
    def _finalize():
        h = acc_ref[...] + b_ref[...]
        h_ref[...] = h.astype(h_ref.dtype)
        # Mask padded class lanes so they do not perturb the row softmax.
        lane = jax.lax.broadcasted_iota(jnp.int32, h.shape, 1)
        hm = jnp.where(lane < valid_out, h, jnp.full_like(h, -1e30))
        m = jnp.max(hm, axis=1, keepdims=True)
        z = hm - m
        lse = jnp.log(jnp.sum(jnp.exp(z), axis=1, keepdims=True))
        logp_ref[...] = (z - lse).astype(logp_ref.dtype)


# ---------------------------------------------------------------------------
# pallas_call wrappers
# ---------------------------------------------------------------------------
def linear_transform(x, w, *, block_m, out_dtype=jnp.bfloat16):
    """XW = X @ W, tiled over rows of X.  Output lane-dense (bf16)."""
    n_pad, f_in = x.shape
    d_pad = w.shape[1]
    return pl.pallas_call(
        _xw_kernel,
        out_shape=jax.ShapeDtypeStruct((n_pad, d_pad), out_dtype),
        grid_spec=pltpu.PrefetchScalarGridSpec(
            num_scalar_prefetch=0,
            grid=(n_pad // block_m,),
            in_specs=[
                pl.BlockSpec((block_m, f_in), lambda i: (i, 0)),
                pl.BlockSpec((f_in, d_pad), lambda i: (0, 0)),
            ],
            out_specs=pl.BlockSpec((block_m, d_pad), lambda i: (i, 0)),
        ),
        compiler_params=pltpu.CompilerParams(
            dimension_semantics=("parallel",),
            vmem_limit_bytes=VMEM_LIMIT_BYTES,
        ),
    )(x, w)


def aggregate(a_hat, xw, b, *, block_m, block_k, apply_relu):
    """out = A_hat @ XW + b (tiled, f32 accumulator scratch, resident XW)."""
    n_pad = a_hat.shape[0]
    d_pad = xw.shape[1]
    kernel = functools.partial(_aggregate_kernel, block_k=block_k, apply_relu=apply_relu)
    return pl.pallas_call(
        kernel,
        out_shape=jax.ShapeDtypeStruct((n_pad, d_pad), jnp.float32),
        grid_spec=pltpu.PrefetchScalarGridSpec(
            num_scalar_prefetch=0,
            grid=(n_pad // block_m, n_pad // block_k),
            in_specs=[
                pl.BlockSpec((block_m, block_k), lambda i, k: (i, k)),   # stream A_hat
                pl.BlockSpec((n_pad, d_pad), lambda i, k: (0, 0)),       # resident XW
                pl.BlockSpec((1, d_pad), lambda i, k: (0, 0)),           # bias
            ],
            out_specs=pl.BlockSpec((block_m, d_pad), lambda i, k: (i, 0)),
            scratch_shapes=[pltpu.VMEM((block_m, d_pad), jnp.float32)],
        ),
        compiler_params=pltpu.CompilerParams(
            dimension_semantics=("parallel", "arbitrary"),
            vmem_limit_bytes=VMEM_LIMIT_BYTES,
        ),
    )(a_hat, xw, b)


def aggregate_logsoftmax(a_hat, xw, b, *, block_m, block_k, valid_out):
    """Second layer aggregation; emits (logits, log_softmax) padded outputs."""
    n_pad = a_hat.shape[0]
    d_pad = xw.shape[1]
    kernel = functools.partial(_aggregate_logsoftmax_kernel,
                               block_k=block_k, valid_out=valid_out)
    return pl.pallas_call(
        kernel,
        out_shape=(jax.ShapeDtypeStruct((n_pad, d_pad), jnp.float32),
                   jax.ShapeDtypeStruct((n_pad, d_pad), jnp.float32)),
        grid_spec=pltpu.PrefetchScalarGridSpec(
            num_scalar_prefetch=0,
            grid=(n_pad // block_m, n_pad // block_k),
            in_specs=[
                pl.BlockSpec((block_m, block_k), lambda i, k: (i, k)),
                pl.BlockSpec((n_pad, d_pad), lambda i, k: (0, 0)),
                pl.BlockSpec((1, d_pad), lambda i, k: (0, 0)),
            ],
            out_specs=(pl.BlockSpec((block_m, d_pad), lambda i, k: (i, 0)),
                       pl.BlockSpec((block_m, d_pad), lambda i, k: (i, 0))),
            scratch_shapes=[pltpu.VMEM((block_m, d_pad), jnp.float32)],
        ),
        compiler_params=pltpu.CompilerParams(
            dimension_semantics=("parallel", "arbitrary"),
            vmem_limit_bytes=VMEM_LIMIT_BYTES,
        ),
    )(a_hat, xw, b)


# ---------------------------------------------------------------------------
# Plain-JAX glue: normalized adjacency, params, forward
# ---------------------------------------------------------------------------
def normalized_adjacency(edge_index, num_nodes):
    """A_hat = D^{-1/2} (A + I) D^{-1/2}, matching PyG gcn_norm(add_self_loops=True)."""
    src, dst = edge_index[0], edge_index[1]
    a = jnp.zeros((num_nodes, num_nodes), jnp.float32)
    a = a.at[dst, src].add(1.0)          # message flows src -> dst
    a = a + jnp.eye(num_nodes, dtype=jnp.float32)
    deg = jnp.sum(a, axis=1)
    d_inv_sqrt = jnp.where(deg > 0, 1.0 / jnp.sqrt(deg), 0.0)
    return d_inv_sqrt[:, None] * a * d_inv_sqrt[None, :]


def glorot(key, shape):
    fan_in, fan_out = shape
    limit = jnp.sqrt(6.0 / (fan_in + fan_out))
    return jax.random.uniform(key, shape, jnp.float32, -limit, limit)


def init_gcn_params(key, dim_in, dim_h, dim_out):
    k1, k2 = jax.random.split(key)
    return {
        "w1": glorot(k1, (dim_in, dim_h)),
        "b1": jnp.zeros((dim_h,), jnp.float32),
        "w2": glorot(k2, (dim_h, dim_out)),
        "b2": jnp.zeros((dim_out,), jnp.float32),
    }


def gcn_forward(params, x, edge_index):
    n, dim_in = x.shape
    dim_h = params["w1"].shape[1]
    dim_out = params["w2"].shape[1]

    n_pad = _round_up(n, 128)
    block = 256 if n_pad % 256 == 0 else 128   # MXU-friendly tiles when they divide
    d_h_pad = _round_up(dim_h, 128)
    d_out_pad = _round_up(dim_out, 128)

    a_hat = normalized_adjacency(edge_index, n)
    a_pad = (jnp.zeros((n_pad, n_pad), jnp.float32)
             .at[:n, :n].set(a_hat).astype(jnp.bfloat16))        # stream in bf16
    x_pad = jnp.zeros((n_pad, dim_in), jnp.float32).at[:n, :].set(x)

    w1 = jnp.zeros((dim_in, d_h_pad), jnp.float32).at[:, :dim_h].set(params["w1"])
    b1 = jnp.zeros((1, d_h_pad), jnp.float32).at[:, :dim_h].set(params["b1"].reshape(1, -1))
    w2 = jnp.zeros((d_h_pad, d_out_pad), jnp.float32).at[:dim_h, :dim_out].set(params["w2"])
    b2 = jnp.zeros((1, d_out_pad), jnp.float32).at[:, :dim_out].set(params["b2"].reshape(1, -1))

    # dropout(p=0.5) -> identity in eval mode
    xw1 = linear_transform(x_pad, w1, block_m=block)                       # bf16 [n_pad, d_h_pad]
    h1 = aggregate(a_pad, xw1, b1, block_m=block, block_k=block, apply_relu=True)

    # dropout(p=0.5) -> identity in eval mode
    xw2 = linear_transform(h1, w2, block_m=block)                          # bf16 [n_pad, d_out_pad]
    h2_p, logp_p = aggregate_logsoftmax(a_pad, xw2, b2,
                                        block_m=block, block_k=block, valid_out=dim_out)
    return h2_p[:n, :dim_out], logp_p[:n, :dim_out]


def gcn_forward_ref(params, x, edge_index):
    """Pure-JAX f32 reference for validation."""
    n = x.shape[0]
    a_hat = normalized_adjacency(edge_index, n)
    h1 = jnp.maximum(a_hat @ (x @ params["w1"]) + params["b1"][None, :], 0.0)
    h2 = a_hat @ (h1 @ params["w2"]) + params["b2"][None, :]
    return h2, jax.nn.log_softmax(h2, axis=1)


# ---------------------------------------------------------------------------
# Demo
# ---------------------------------------------------------------------------
if __name__ == "__main__":
    N, DIM_IN, DIM_H, DIM_OUT = 16, 8, 32, 4

    key = jax.random.PRNGKey(0)
    k_x, k_e, k_p = jax.random.split(key, 3)

    # Node features [N, DIM_IN]
    x = jax.random.normal(k_x, (N, DIM_IN), jnp.float32)

    # Deterministic small graph: a ring plus a few random undirected chords.
    ring_src = jnp.arange(N, dtype=jnp.int32)
    ring_dst = (ring_src + 1) % N
    extra_src = jax.random.randint(k_e, (4,), 0, N, dtype=jnp.int32)
    extra_dst = (extra_src + 5) % N
    src = jnp.concatenate([ring_src, extra_src])
    dst = jnp.concatenate([ring_dst, extra_dst])
    edge_index = jnp.stack(
        [jnp.concatenate([src, dst]), jnp.concatenate([dst, src])], axis=0
    )  # [2, 40]

    params = init_gcn_params(k_p, DIM_IN, DIM_H, DIM_OUT)

    h, logp = jax.jit(gcn_forward)(params, x, edge_index)
    jax.block_until_ready((h, logp))

    assert h.shape == (N, DIM_OUT) and logp.shape == (N, DIM_OUT)
    # log_softmax rows must sum (in prob space) to ~1
    assert jnp.allclose(jnp.sum(jnp.exp(logp), axis=1), 1.0, atol=1e-4)

    # Validate against pure-JAX f32 reference (bf16 streaming -> loose tolerance)
    h_ref, logp_ref = gcn_forward_ref(params, x, edge_index)
    assert jnp.allclose(h, h_ref, atol=0.1, rtol=0.1)
    assert jnp.allclose(logp, logp_ref, atol=0.1, rtol=0.1)

    print("KERNEL_OK")
</pallas_src>

<mosaic_0001>
module attributes {stable_mosaic.version = 11 : i64} {
  func.func @_xw_kernel(%arg0: i32, %arg1: memref<128x128xf32, #tpu.memory_space<vmem>>, %arg2: memref<128x128xf32, #tpu.memory_space<vmem>>, %arg3: memref<128x128xbf16, #tpu.memory_space<vmem>>) attributes {dimension_semantics = [#tpu.dimension_semantics<parallel>], iteration_bounds = array<i64: 1>, scalar_prefetch = 0 : i64, scratch_operands = 0 : i64, tpu.core_type = #tpu.core_type<tc>, window_params = [{transform_indices = @transform_0, window_bounds = array<i64: 128, 128>}, {pipeline_mode = #tpu.pipeline_mode<synchronous>, transform_indices = @transform_1, window_bounds = array<i64: 128, 128>}, {transform_indices = @transform_2, window_bounds = array<i64: 128, 128>}]} {
    %c0 = arith.constant 0 : index
    %c0_0 = arith.constant 0 : index
    %0 = vector.load %arg1[%c0, %c0_0] : memref<128x128xf32, #tpu.memory_space<vmem>>, vector<128x128xf32>
    %c0_1 = arith.constant 0 : index
    %c0_2 = arith.constant 0 : index
    %1 = vector.load %arg2[%c0_1, %c0_2] : memref<128x128xf32, #tpu.memory_space<vmem>>, vector<128x128xf32>
    %cst = arith.constant dense<0.000000e+00> : vector<128x128xf32>
    %2 = tpu.matmul %0, %1, %cst {dimension_numbers = #tpu.dot_dimension_numbers<[1], [0], [0], [1], [0, 0, 1, 1], [], []>} : vector<128x128xf32>, vector<128x128xf32>, vector<128x128xf32> -> vector<128x128xf32>
    %3 = arith.truncf %2 : vector<128x128xf32> to vector<128x128xbf16>
    %c0_3 = arith.constant 0 : index
    %c0_4 = arith.constant 0 : index
    %4 = vector.load %arg3[%c0_3, %c0_4] : memref<128x128xbf16, #tpu.memory_space<vmem>>, vector<128x128xbf16>
    tpu.vector_store %arg3[%c0_3, %c0_4], %3 {strides = array<i32>} : memref<128x128xbf16, #tpu.memory_space<vmem>>, vector<128x128xbf16>,
    return
  }
  func.func @transform_0(%arg0: i32) -> (i32, i32) {
    %c0_i32 = arith.constant 0 : i32
    %c0_i32_0 = arith.constant 0 : i32
    return %arg0, %c0_i32 : i32, i32
  }
  func.func @transform_1(%arg0: i32) -> (i32, i32) {
    %c0_i32 = arith.constant 0 : i32
    %c0_i32_0 = arith.constant 0 : i32
    %c0_i32_1 = arith.constant 0 : i32
    return %c0_i32, %c0_i32_0 : i32, i32
  }
  func.func @transform_2(%arg0: i32) -> (i32, i32) {
    %c0_i32 = arith.constant 0 : i32
    %c0_i32_0 = arith.constant 0 : i32
    return %arg0, %c0_i32 : i32, i32
  }
}

module attributes {stable_mosaic.version = 11 : i64} {
  func.func @_xw_kernel(%arg0: i32, %arg1: memref<128x8xf32, #tpu.memory_space<vmem>>, %arg2: memref<8x128xf32, #tpu.memory_space<vmem>>, %arg3: memref<128x128xbf16, #tpu.memory_space<vmem>>) attributes {dimension_semantics = [#tpu.dimension_semantics<parallel>], iteration_bounds = array<i64: 1>, scalar_prefetch = 0 : i64, scratch_operands = 0 : i64, tpu.core_type = #tpu.core_type<tc>, window_params = [{transform_indices = @transform_0, window_bounds = array<i64: 128, 8>}, {pipeline_mode = #tpu.pipeline_mode<synchronous>, transform_indices = @transform_1, window_bounds = array<i64: 8, 128>}, {transform_indices = @transform_2, window_bounds = array<i64: 128, 128>}]} {
    %c0 = arith.constant 0 : index
    %c0_0 = arith.constant 0 : index
    %0 = vector.load %arg1[%c0, %c0_0] : memref<128x8xf32, #tpu.memory_space<vmem>>, vector<128x8xf32>
    %c0_1 = arith.constant 0 : index
    %c0_2 = arith.constant 0 : index
    %1 = vector.load %arg2[%c0_1, %c0_2] : memref<8x128xf32, #tpu.memory_space<vmem>>, vector<8x128xf32>
    %cst = arith.constant dense<0.000000e+00> : vector<128x128xf32>
    %2 = tpu.matmul %0, %1, %cst {dimension_numbers = #tpu.dot_dimension_numbers<[1], [0], [0], [1], [0, 0, 1, 1], [], []>} : vector<128x8xf32>, vector<8x128xf32>, vector<128x128xf32> -> vector<128x128xf32>
    %3 = arith.truncf %2 : vector<128x128xf32> to vector<128x128xbf16>
    %c0_3 = arith.constant 0 : index
    %c0_4 = arith.constant 0 : index
    %4 = vector.load %arg3[%c0_3, %c0_4] : memref<128x128xbf16, #tpu.memory_space<vmem>>, vector<128x128xbf16>
    tpu.vector_store %arg3[%c0_3, %c0_4], %3 {strides = array<i32>} : memref<128x128xbf16, #tpu.memory_space<vmem>>, vector<128x128xbf16>,
    return
  }
  func.func @transform_0(%arg0: i32) -> (i32, i32) {
    %c0_i32 = arith.constant 0 : i32
    %c0_i32_0 = arith.constant 0 : i32
    return %arg0, %c0_i32 : i32, i32
  }
  func.func @transform_1(%arg0: i32) -> (i32, i32) {
    %c0_i32 = arith.constant 0 : i32
    %c0_i32_0 = arith.constant 0 : i32
    %c0_i32_1 = arith.constant 0 : i32
    return %c0_i32, %c0_i32_0 : i32, i32
  }
  func.func @transform_2(%arg0: i32) -> (i32, i32) {
    %c0_i32 = arith.constant 0 : i32
    %c0_i32_0 = arith.constant 0 : i32
    return %arg0, %c0_i32 : i32, i32
  }
}

module attributes {stable_mosaic.version = 11 : i64} {
  func.func @_aggregate_kernel(%arg0: i32, %arg1: i32, %arg2: memref<128x128xbf16, #tpu.memory_space<vmem>>, %arg3: memref<128x128xbf16, #tpu.memory_space<vmem>>, %arg4: memref<1x128xf32, #tpu.memory_space<vmem>>, %arg5: memref<128x128xf32, #tpu.memory_space<vmem>>, %arg6: memref<128x128xf32, #tpu.memory_space<vmem>>) attributes {dimension_semantics = [#tpu.dimension_semantics<parallel>, #tpu.dimension_semantics<arbitrary>], iteration_bounds = array<i64: 1, 1>, scalar_prefetch = 0 : i64, scratch_operands = 1 : i64, tpu.core_type = #tpu.core_type<tc>, window_params = [{transform_indices = @transform_0, window_bounds = array<i64: 128, 128>}, {pipeline_mode = #tpu.pipeline_mode<synchronous>, transform_indices = @transform_1, window_bounds = array<i64: 128, 128>}, {pipeline_mode = #tpu.pipeline_mode<synchronous>, transform_indices = @transform_2, window_bounds = array<i64: 1, 128>}, {transform_indices = @transform_3, window_bounds = array<i64: 128, 128>}]} {
    %c0_i32 = arith.constant 0 : i32
    %0 = arith.cmpi eq, %arg1, %c0_i32 : i32
    %1 = arith.extui %0 : i1 to i32
    %c0_i32_0 = arith.constant 0 : i32
    %2 = arith.cmpi ne, %1, %c0_i32_0 : i32
    scf.if %2 {
      %cst_9 = arith.constant 0.000000e+00 : f32
      %15 = vector.broadcast %cst_9 : f32 to vector<128x128xf32>
      %c0_10 = arith.constant 0 : index
      %c0_11 = arith.constant 0 : index
      %16 = vector.load %arg6[%c0_10, %c0_11] : memref<128x128xf32, #tpu.memory_space<vmem>>, vector<128x128xf32>
      tpu.vector_store %arg6[%c0_10, %c0_11], %15 {strides = array<i32>} : memref<128x128xf32, #tpu.memory_space<vmem>>, vector<128x128xf32>,
    } else {
    }
    %c128_i32 = arith.constant 128 : i32
    %3 = arith.muli %arg1, %c128_i32 : i32
    %4 = tpu.assume_multiple %3, 128 : i32
    %5 = arith.index_cast %4 : i32 to index
    %c0 = arith.constant 0 : index
    %6 = vector.load %arg3[%5, %c0] : memref<128x128xbf16, #tpu.memory_space<vmem>>, vector<128x128xbf16>
    %c0_1 = arith.constant 0 : index
    %c0_2 = arith.constant 0 : index
    %7 = vector.load %arg6[%c0_1, %c0_2] : memref<128x128xf32, #tpu.memory_space<vmem>>, vector<128x128xf32>
    %c0_3 = arith.constant 0 : index
    %c0_4 = arith.constant 0 : index
    %8 = vector.load %arg2[%c0_3, %c0_4] : memref<128x128xbf16, #tpu.memory_space<vmem>>, vector<128x128xbf16>
    %cst = arith.constant dense<0.000000e+00> : vector<128x128xf32>
    %9 = tpu.matmul %8, %6, %cst {dimension_numbers = #tpu.dot_dimension_numbers<[1], [0], [0], [1], [0, 0, 1, 1], [], []>} : vector<128x128xbf16>, vector<128x128xbf16>, vector<128x128xf32> -> vector<128x128xf32>
    %10 = arith.addf %7, %9 : vector<128x128xf32>
    %c0_5 = arith.constant 0 : index
    %c0_6 = arith.constant 0 : index
    %11 = vector.load %arg6[%c0_5, %c0_6] : memref<128x128xf32, #tpu.memory_space<vmem>>, vector<128x128xf32>
    tpu.vector_store %arg6[%c0_5, %c0_6], %10 {strides = array<i32>} : memref<128x128xf32, #tpu.memory_space<vmem>>, vector<128x128xf32>,
    %c0_i32_7 = arith.constant 0 : i32
    %12 = arith.cmpi eq, %arg1, %c0_i32_7 : i32
    %13 = arith.extui %12 : i1 to i32
    %c0_i32_8 = arith.constant 0 : i32
    %14 = arith.cmpi ne, %13, %c0_i32_8 : i32
    scf.if %14 {
      %c0_9 = arith.constant 0 : index
      %c0_10 = arith.constant 0 : index
      %15 = vector.load %arg6[%c0_9, %c0_10] : memref<128x128xf32, #tpu.memory_space<vmem>>, vector<128x128xf32>
      %c0_11 = arith.constant 0 : index
      %c0_12 = arith.constant 0 : index
      %16 = vector.load %arg4[%c0_11, %c0_12] : memref<1x128xf32, #tpu.memory_space<vmem>>, vector<1x128xf32>
      %17 = vector.broadcast %16 : vector<1x128xf32> to vector<128x128xf32>
      %18 = arith.addf %15, %17 : vector<128x128xf32>
      %cst_13 = arith.constant 0.000000e+00 : f32
      %19 = vector.broadcast %cst_13 : f32 to vector<128x128xf32>
      %20 = arith.maximumf %18, %19 : vector<128x128xf32>
      %c0_14 = arith.constant 0 : index
      %c0_15 = arith.constant 0 : index
      %21 = vector.load %arg5[%c0_14, %c0_15] : memref<128x128xf32, #tpu.memory_space<vmem>>, vector<128x128xf32>
      tpu.vector_store %arg5[%c0_14, %c0_15], %20 {strides = array<i32>} : memref<128x128xf32, #tpu.memory_space<vmem>>, vector<128x128xf32>,
    } else {
    }
    return
  }
  func.func @transform_0(%arg0: i32, %arg1: i32) -> (i32, i32) {
    %c0_i32 = arith.constant 0 : i32
    return %arg0, %arg1 : i32, i32
  }
  func.func @transform_1(%arg0: i32, %arg1: i32) -> (i32, i32) {
    %c0_i32 = arith.constant 0 : i32
    %c0_i32_0 = arith.constant 0 : i32
    %c0_i32_1 = arith.constant 0 : i32
    return %c0_i32, %c0_i32_0 : i32, i32
  }
  func.func @transform_2(%arg0: i32, %arg1: i32) -> (i32, i32) {
    %c0_i32 = arith.constant 0 : i32
    %c0_i32_0 = arith.constant 0 : i32
    %c0_i32_1 = arith.constant 0 : i32
    return %c0_i32, %c0_i32_0 : i32, i32
  }
  func.func @transform_3(%arg0: i32, %arg1: i32) -> (i32, i32) {
    %c0_i32 = arith.constant 0 : i32
    %c0_i32_0 = arith.constant 0 : i32
    return %arg0, %c0_i32 : i32, i32
  }
}

module attributes {stable_mosaic.version = 11 : i64} {
  func.func @_aggregate_logsoftmax_kernel(%arg0: i32, %arg1: i32, %arg2: memref<128x128xbf16, #tpu.memory_space<vmem>>, %arg3: memref<128x128xbf16, #tpu.memory_space<vmem>>, %arg4: memref<1x128xf32, #tpu.memory_space<vmem>>, %arg5: memref<128x128xf32, #tpu.memory_space<vmem>>, %arg6: memref<128x128xf32, #tpu.memory_space<vmem>>, %arg7: memref<128x128xf32, #tpu.memory_space<vmem>>) attributes {dimension_semantics = [#tpu.dimension_semantics<parallel>, #tpu.dimension_semantics<arbitrary>], iteration_bounds = array<i64: 1, 1>, scalar_prefetch = 0 : i64, scratch_operands = 1 : i64, tpu.core_type = #tpu.core_type<tc>, window_params = [{transform_indices = @transform_0, window_bounds = array<i64: 128, 128>}, {pipeline_mode = #tpu.pipeline_mode<synchronous>, transform_indices = @transform_1, window_bounds = array<i64: 128, 128>}, {pipeline_mode = #tpu.pipeline_mode<synchronous>, transform_indices = @transform_2, window_bounds = array<i64: 1, 128>}, {transform_indices = @transform_3, window_bounds = array<i64: 128, 128>}, {transform_indices = @transform_4, window_bounds = array<i64: 128, 128>}]} {
    %c0_i32 = arith.constant 0 : i32
    %0 = arith.cmpi eq, %arg1, %c0_i32 : i32
    %1 = arith.extui %0 : i1 to i32
    %c0_i32_0 = arith.constant 0 : i32
    %2 = arith.cmpi ne, %1, %c0_i32_0 : i32
    scf.if %2 {
      %cst_9 = arith.constant 0.000000e+00 : f32
      %15 = vector.broadcast %cst_9 : f32 to vector<128x128xf32>
      %c0_10 = arith.constant 0 : index
      %c0_11 = arith.constant 0 : index
      %16 = vector.load %arg7[%c0_10, %c0_11] : memref<128x128xf32, #tpu.memory_space<vmem>>, vector<128x128xf32>
      tpu.vector_store %arg7[%c0_10, %c0_11], %15 {strides = array<i32>} : memref<128x128xf32, #tpu.memory_space<vmem>>, vector<128x128xf32>,
    } else {
    }
    %c128_i32 = arith.constant 128 : i32
    %3 = arith.muli %arg1, %c128_i32 : i32
    %4 = tpu.assume_multiple %3, 128 : i32
    %5 = arith.index_cast %4 : i32 to index
    %c0 = arith.constant 0 : index
    %6 = vector.load %arg3[%5, %c0] : memref<128x128xbf16, #tpu.memory_space<vmem>>, vector<128x128xbf16>
    %c0_1 = arith.constant 0 : index
    %c0_2 = arith.constant 0 : index
    %7 = vector.load %arg7[%c0_1, %c0_2] : memref<128x128xf32, #tpu.memory_space<vmem>>, vector<128x128xf32>
    %c0_3 = arith.constant 0 : index
    %c0_4 = arith.constant 0 : index
    %8 = vector.load %arg2[%c0_3, %c0_4] : memref<128x128xbf16, #tpu.memory_space<vmem>>, vector<128x128xbf16>
    %cst = arith.constant dense<0.000000e+00> : vector<128x128xf32>
    %9 = tpu.matmul %8, %6, %cst {dimension_numbers = #tpu.dot_dimension_numbers<[1], [0], [0], [1], [0, 0, 1, 1], [], []>} : vector<128x128xbf16>, vector<128x128xbf16>, vector<128x128xf32> -> vector<128x128xf32>
    %10 = arith.addf %7, %9 : vector<128x128xf32>
    %c0_5 = arith.constant 0 : index
    %c0_6 = arith.constant 0 : index
    %11 = vector.load %arg7[%c0_5, %c0_6] : memref<128x128xf32, #tpu.memory_space<vmem>>, vector<128x128xf32>
    tpu.vector_store %arg7[%c0_5, %c0_6], %10 {strides = array<i32>} : memref<128x128xf32, #tpu.memory_space<vmem>>, vector<128x128xf32>,
    %c0_i32_7 = arith.constant 0 : i32
    %12 = arith.cmpi eq, %arg1, %c0_i32_7 : i32
    %13 = arith.extui %12 : i1 to i32
    %c0_i32_8 = arith.constant 0 : i32
    %14 = arith.cmpi ne, %13, %c0_i32_8 : i32
    scf.if %14 {
      %c0_9 = arith.constant 0 : index
      %c0_10 = arith.constant 0 : index
      %15 = vector.load %arg7[%c0_9, %c0_10] : memref<128x128xf32, #tpu.memory_space<vmem>>, vector<128x128xf32>
      %c0_11 = arith.constant 0 : index
      %c0_12 = arith.constant 0 : index
      %16 = vector.load %arg4[%c0_11, %c0_12] : memref<1x128xf32, #tpu.memory_space<vmem>>, vector<1x128xf32>
      %17 = vector.broadcast %16 : vector<1x128xf32> to vector<128x128xf32>
      %18 = arith.addf %15, %17 : vector<128x128xf32>
      %c0_13 = arith.constant 0 : index
      %c0_14 = arith.constant 0 : index
      %19 = vector.load %arg5[%c0_13, %c0_14] : memref<128x128xf32, #tpu.memory_space<vmem>>, vector<128x128xf32>
      tpu.vector_store %arg5[%c0_13, %c0_14], %18 {strides = array<i32>} : memref<128x128xf32, #tpu.memory_space<vmem>>, vector<128x128xf32>,
      %20 = tpu.iota {dimensions = array<i32: 1>} : vector<128x128xi32>
      %c4_i32 = arith.constant 4 : i32
      %21 = vector.broadcast %c4_i32 : i32 to vector<128x128xi32>
      %22 = arith.cmpi slt, %20, %21 : vector<128x128xi32>
      %cst_15 = arith.constant -1.000000e+30 : f32
      %23 = vector.broadcast %cst_15 : f32 to vector<128x128xf32>
      %24 = arith.select %22, %18, %23 : vector<128x128xi1>, vector<128x128xf32>
      %cst_16 = arith.constant dense<0xFF800000> : vector<128xf32>
      %25 = vector.multi_reduction <maximumf>, %24, %cst_16 [1] : vector<128x128xf32> to vector<128xf32>
      %26 = vector.shape_cast %25 : vector<128xf32> to vector<128x1xf32>
      %27 = vector.broadcast %26 : vector<128x1xf32> to vector<128x128xf32>
      %28 = arith.subf %24, %27 : vector<128x128xf32>
      %29 = math.exp %28 : vector<128x128xf32>
      %cst_17 = arith.constant dense<0.000000e+00> : vector<128xf32>
      %30 = vector.multi_reduction <add>, %29, %cst_17 [1] : vector<128x128xf32> to vector<128xf32>
      %31 = vector.shape_cast %30 : vector<128xf32> to vector<128x1xf32>
      %32 = math.log %31 : vector<128x1xf32>
      %33 = vector.broadcast %32 : vector<128x1xf32> to vector<128x128xf32>
      %34 = arith.subf %28, %33 : vector<128x128xf32>
      %c0_18 = arith.constant 0 : index
      %c0_19 = arith.constant 0 : index
      %35 = vector.load %arg6[%c0_18, %c0_19] : memref<128x128xf32, #tpu.memory_space<vmem>>, vector<128x128xf32>
      tpu.vector_store %arg6[%c0_18, %c0_19], %34 {strides = array<i32>} : memref<128x128xf32, #tpu.memory_space<vmem>>, vector<128x128xf32>,
    } else {
    }
    return
  }
  func.func @transform_0(%arg0: i32, %arg1: i32) -> (i32, i32) {
    %c0_i32 = arith.constant 0 : i32
    return %arg0, %arg1 : i32, i32
  }
  func.func @transform_1(%arg0: i32, %arg1: i32) -> (i32, i32) {
    %c0_i32 = arith.constant 0 : i32
    %c0_i32_0 = arith.constant 0 : i32
    %c0_i32_1 = arith.constant 0 : i32
    return %c0_i32, %c0_i32_0 : i32, i32
  }
  func.func @transform_2(%arg0: i32, %arg1: i32) -> (i32, i32) {
    %c0_i32 = arith.constant 0 : i32
    %c0_i32_0 = arith.constant 0 : i32
    %c0_i32_1 = arith.constant 0 : i32
    return %c0_i32, %c0_i32_0 : i32, i32
  }
  func.func @transform_3(%arg0: i32, %arg1: i32) -> (i32, i32) {
    %c0_i32 = arith.constant 0 : i32
    %c0_i32_0 = arith.constant 0 : i32
    return %arg0, %c0_i32 : i32, i32
  }
  func.func @transform_4(%arg0: i32, %arg1: i32) -> (i32, i32) {
    %c0_i32 = arith.constant 0 : i32
    %c0_i32_0 = arith.constant 0 : i32
    return %arg0, %c0_i32 : i32, i32
  }
}

</mosaic_0001>

<llo_original>
// kernel: gcn_forward.4
$region0: #{gcn_forward.4}
  #allocation0 [shape = 'u32[]', space=smem, size = 0x4, offset = 0x4, fixed_abs, tag = 'smem constant byte address 0x4 - core index']
  #allocation1 [shape = 'u32[144,128]{1,0:T(1,128)}', space=vmem, size = 0x12000, scoped, tag = 'internal scratch']
  %s0 = inlined_call_operand.vmem [shape: f32[128,8], index: 0, kind: input, shape index: {}]
  %s1 = inlined_call_operand.vmem [shape: f32[8,128], index: 1, kind: input, shape index: {}]
  %s2 = inlined_call_operand.vmem [shape: bf16[128,128], index: 2, kind: output, shape index: {}]
  %s3 = sld [smem:[#allocation0]]
  $region18: #{gcn_forward.4} parent=0
    _
  %s5 = ssub.s32 1, %s3
  %s6 = scalar_select 0, %s5, %s3
  // Predicated region
  $region2: #{gcn_forward.4} parent=0 // pred_check
    _
  $region3: #{gcn_forward.4} parent=0 // pred_check_branch
    %8 = sbr.rel (0) target = $region5
  $region4: #{gcn_forward.4} parent=0 // pred_region
    _
  $region5: #{gcn_forward.4} parent=0 // pred_fallthru
    _
  // Predicated region
  $region6: #{gcn_forward.4} parent=0 // pred_check
    _
  $region7: #{gcn_forward.4} parent=0 // pred_check_branch
    %10 = sbr.rel (0) target = $region9
  $region8: #{gcn_forward.4} parent=0 // pred_region
    _
  $region9: #{gcn_forward.4} parent=0 // pred_fallthru
    _
  %v11 = vld [vmem:[%s0] sm:$0xff]
  %v12 = vld [vmem:[%s0 + $0x8] sm:$0xff]
  %v13 = vld [vmem:[%s0 + $0x10] sm:$0xff]
  %v14 = vld [vmem:[%s0 + $0x18] sm:$0xff]
  %v15 = vld [vmem:[%s0 + $0x20] sm:$0xff]
  %v16 = vld [vmem:[%s0 + $0x28] sm:$0xff]
  %v17 = vld [vmem:[%s0 + $0x30] sm:$0xff]
  %v18 = vld [vmem:[%s0 + $0x38] sm:$0xff]
  %v19 = vld [vmem:[%s0 + $0x40] sm:$0xff]
  %v20 = vld [vmem:[%s0 + $0x48] sm:$0xff]
  %v21 = vld [vmem:[%s0 + $0x50] sm:$0xff]
  %v22 = vld [vmem:[%s0 + $0x58] sm:$0xff]
  %v23 = vld [vmem:[%s0 + $0x60] sm:$0xff]
  %v24 = vld [vmem:[%s0 + $0x68] sm:$0xff]
  %v25 = vld [vmem:[%s0 + $0x70] sm:$0xff]
  %v26 = vld [vmem:[%s0 + $0x78] sm:$0xff]
  %v27 = vld [vmem:[%s1] sm:$0xff]
  %vm28 = vcmask 64512
  %v30 = vsel %vm28, %v11, 0
  %v33 = vsel %vm28, %v12, 0
  %v36 = vsel %vm28, %v13, 0
  %v39 = vsel %vm28, %v14, 0
  %v42 = vsel %vm28, %v15, 0
  %v45 = vsel %vm28, %v16, 0
  %v48 = vsel %vm28, %v17, 0
  %v51 = vsel %vm28, %v18, 0
  %v54 = vsel %vm28, %v19, 0
  %v57 = vsel %vm28, %v20, 0
  %v60 = vsel %vm28, %v21, 0
  %v63 = vsel %vm28, %v22, 0
  %v66 = vsel %vm28, %v23, 0
  %v69 = vsel %vm28, %v24, 0
  %v72 = vsel %vm28, %v25, 0
  %v75 = vsel %vm28, %v26, 0
  %77 = vmatprep.subr.mxu0 0.0
  %78 = vmatpush1.msra.mxu0 %v27
  %79 = vmatprep.subr.mxu0 0.0
  %80 = vmatpush1.msra.mxu0 0.0
  %81 = vmatprep.subr.mxu0 0.0
  %82 = vmatpush1.msra.mxu0 0.0
  %83 = vmatprep.subr.mxu0 0.0
  %84 = vmatpush1.msra.mxu0 0.0
  %85 = vmatprep.subr.mxu0 0.0
  %86 = vmatpush1.msra.mxu0 0.0
  %87 = vmatprep.subr.mxu0 0.0
  %88 = vmatpush1.msra.mxu0 0.0
  %89 = vmatprep.subr.mxu0 0.0
  %90 = vmatpush1.msra.mxu0 0.0
  %91 = vmatprep.subr.mxu0 0.0
  %92 = vmatpush1.msra.mxu0 0.0
  %93 = vmatprep.subr.mxu0 0.0
  %94 = vmatpush1.msra.mxu0 0.0
  %95 = vmatprep.subr.mxu0 0.0
  %96 = vmatpush1.msra.mxu0 0.0
  %97 = vmatprep.subr.mxu0 0.0
  %98 = vmatpush1.msra.mxu0 0.0
  %99 = vmatprep.subr.mxu0 0.0
  %100 = vmatpush1.msra.mxu0 0.0
  %101 = vmatprep.subr.mxu0 0.0
  %102 = vmatpush1.msra.mxu0 0.0
  %103 = vmatprep.subr.mxu0 0.0
  %104 = vmatpush1.msra.mxu0 0.0
  %105 = vmatprep.subr.mxu0 0.0
  %106 = vmatpush1.msra.mxu0 0.0
  %107 = vmatprep.subr.mxu0 0.0
  %108 = vmatpush1.msra.mxu0 0.0
  %109 = vmatprep.subr.mxu0 0.0
  %110 = vmatpush1.msra.mxu0 0.0
  %111 = vmatprep.subr.mxu0 0.0
  %112 = vmatpush1.msra.mxu0 0.0
  %113 = vmatprep.subr.mxu0 0.0
  %114 = vmatpush1.msra.mxu0 0.0
  %115 = vmatprep.subr.mxu0 0.0
  %116 = vmatpush1.msra.mxu0 0.0
  %117 = vmatprep.subr.mxu0 0.0
  %118 = vmatpush1.msra.mxu0 0.0
  %119 = vmatprep.subr.mxu0 0.0
  %120 = vmatpush1.msra.mxu0 0.0
  %121 = vmatprep.subr.mxu0 0.0
  %122 = vmatpush1.msra.mxu0 0.0
  %123 = vmatprep.subr.mxu0 0.0
  %124 = vmatpush1.msra.mxu0 0.0
  %125 = vmatprep.subr.mxu0 0.0
  %126 = vmatpush1.msra.mxu0 0.0
  %127 = vmatprep.subr.mxu0 0.0
  %128 = vmatpush1.msra.mxu0 0.0
  %129 = vmatprep.subr.mxu0 0.0
  %130 = vmatpush1.msra.mxu0 0.0
  %131 = vmatprep.subr.mxu0 0.0
  %132 = vmatpush1.msra.mxu0 0.0
  %133 = vmatprep.subr.mxu0 0.0
  %134 = vmatpush1.msra.mxu0 0.0
  %135 = vmatprep.subr.mxu0 0.0
  %136 = vmatpush1.msra.mxu0 0.0
  %137 = vmatprep.subr.mxu0 0.0
  %138 = vmatpush1.msra.mxu0 0.0
  %139 = vmatprep.subr.mxu0 0.0
  %140 = vmatpush1.msra.mxu0 0.0
  %141 = vmatprep.mubr.f32.mxu0 0.0
  %142 = vmatmul.mubr.f32.gmra.mrb[0].mxu0 %v30
  %v143 = vpop.f32.mrb[0].mxu0
  %v144 = vadd.f32 0.0, %v143
  %v145 = vpop.f32.mrb[0].mxu0
  %146 = vmatprep.mubr.f32.mxu0 0.0
  %147 = vmatmul.mubr.f32.gmra.mrb[0].mxu0 %v33
  %v148 = vpop.f32.mrb[0].mxu0
  %v149 = vadd.f32 0.0, %v148
  %v150 = vpop.f32.mrb[0].mxu0
  %151 = vmatprep.mubr.f32.mxu0 0.0
  %152 = vmatmul.mubr.f32.gmra.mrb[0].mxu0 %v36
  %v153 = vpop.f32.mrb[0].mxu0
  %v154 = vadd.f32 0.0, %v153
  %v155 = vpop.f32.mrb[0].mxu0
  %156 = vmatprep.mubr.f32.mxu0 0.0
  %157 = vmatmul.mubr.f32.gmra.mrb[0].mxu0 %v39
  %v158 = vpop.f32.mrb[0].mxu0
  %v159 = vadd.f32 0.0, %v158
  %v160 = vpop.f32.mrb[0].mxu0
  %161 = vmatprep.mubr.f32.mxu0 0.0
  %162 = vmatmul.mubr.f32.gmra.mrb[0].mxu0 %v42
  %v163 = vpop.f32.mrb[0].mxu0
  %v164 = vadd.f32 0.0, %v163
  %v165 = vpop.f32.mrb[0].mxu0
  %166 = vmatprep.mubr.f32.mxu0 0.0
  %167 = vmatmul.mubr.f32.gmra.mrb[0].mxu0 %v45
  %v168 = vpop.f32.mrb[0].mxu0
  %v169 = vadd.f32 0.0, %v168
  %v170 = vpop.f32.mrb[0].mxu0
  %171 = vmatprep.mubr.f32.mxu0 0.0
  %172 = vmatmul.mubr.f32.gmra.mrb[0].mxu0 %v48
  %v173 = vpop.f32.mrb[0].mxu0
  %v174 = vadd.f32 0.0, %v173
  %v175 = vpop.f32.mrb[0].mxu0
  %176 = vmatprep.mubr.f32.mxu0 0.0
  %177 = vmatmul.mubr.f32.gmra.mrb[0].mxu0 %v51
  %v178 = vpop.f32.mrb[0].mxu0
  %v179 = vadd.f32 0.0, %v178
  %v180 = vpop.f32.mrb[0].mxu0
  %181 = vmatprep.mubr.f32.mxu0 0.0
  %182 = vmatmul.mubr.f32.gmra.mrb[0].mxu0 %v54
  %v183 = vpop.f32.mrb[0].mxu0
  %v184 = vadd.f32 0.0, %v183
  %v185 = vpop.f32.mrb[0].mxu0
  %186 = vmatprep.mubr.f32.mxu0 0.0
  %187 = vmatmul.mubr.f32.gmra.mrb[0].mxu0 %v57
  %v188 = vpop.f32.mrb[0].mxu0
  %v189 = vadd.f32 0.0, %v188
  %v190 = vpop.f32.mrb[0].mxu0
  %191 = vmatprep.mubr.f32.mxu0 0.0
  %192 = vmatmul.mubr.f32.gmra.mrb[0].mxu0 %v60
  %v193 = vpop.f32.mrb[0].mxu0
  %v194 = vadd.f32 0.0, %v193
  %v195 = vpop.f32.mrb[0].mxu0
  %196 = vmatprep.mubr.f32.mxu0 0.0
  %197 = vmatmul.mubr.f32.gmra.mrb[0].mxu0 %v63
  %v198 = vpop.f32.mrb[0].mxu0
  %v199 = vadd.f32 0.0, %v198
  %v200 = vpop.f32.mrb[0].mxu0
  %201 = vmatprep.mubr.f32.mxu0 0.0
  %202 = vmatmul.mubr.f32.gmra.mrb[0].mxu0 %v66
  %v203 = vpop.f32.mrb[0].mxu0
  %v204 = vadd.f32 0.0, %v203
  %v205 = vpop.f32.mrb[0].mxu0
  %206 = vmatprep.mubr.f32.mxu0 0.0
  %207 = vmatmul.mubr.f32.gmra.mrb[0].mxu0 %v69
  %v208 = vpop.f32.mrb[0].mxu0
  %v209 = vadd.f32 0.0, %v208
  %v210 = vpop.f32.mrb[0].mxu0
  %211 = vmatprep.mubr.f32.mxu0 0.0
  %212 = vmatmul.mubr.f32.gmra.mrb[0].mxu0 %v72
  %v213 = vpop.f32.mrb[0].mxu0
  %v214 = vadd.f32 0.0, %v213
  %v215 = vpop.f32.mrb[0].mxu0
  %216 = vmatprep.mubr.f32.mxu0 0.0
  %217 = vmatmul.mubr.f32.gmra.mrb[0].mxu0 %v75
  %v218 = vpop.f32.mrb[0].mxu0
  %v219 = vadd.f32 0.0, %v218
  %v220 = vpop.f32.mrb[0].mxu0
  %221 = vdwg.mxu0
  %v222 = vpack.c.bf16 %v149, %v144
  %v223 = vpack.c.bf16 %v159, %v154
  %v224 = vpack.c.bf16 %v169, %v164
  %v225 = vpack.c.bf16 %v179, %v174
  %v226 = vpack.c.bf16 %v189, %v184
  %v227 = vpack.c.bf16 %v199, %v194
  %v228 = vpack.c.bf16 %v209, %v204
  %v229 = vpack.c.bf16 %v219, %v214
  %v238 = vunpack.c.l.b16 %v222
  %v239 = vunpack.c.h.b16 %v222
  %v240 = vunpack.c.l.b16 %v223
  %v241 = vunpack.c.h.b16 %v223
  %v242 = vunpack.c.l.b16 %v224
  %v243 = vunpack.c.h.b16 %v224
  %v244 = vunpack.c.l.b16 %v225
  %v245 = vunpack.c.h.b16 %v225
  %v246 = vunpack.c.l.b16 %v226
  %v247 = vunpack.c.h.b16 %v226
  %v248 = vunpack.c.l.b16 %v227
  %v249 = vunpack.c.h.b16 %v227
  %v250 = vunpack.c.l.b16 %v228
  %v251 = vunpack.c.h.b16 %v228
  %v252 = vunpack.c.l.b16 %v229
  %v253 = vunpack.c.h.b16 %v229
  %v254 = vpack.c.b16 %v238, %v238
  %v255 = vpack.c.b16 %v239, %v239
  %v256 = vpack.c.b16 %v240, %v240
  %v257 = vpack.c.b16 %v241, %v241
  %v258 = vpack.c.b16 %v242, %v242
  %v259 = vpack.c.b16 %v243, %v243
  %v260 = vpack.c.b16 %v244, %v244
  %v261 = vpack.c.b16 %v245, %v245
  %v262 = vpack.c.b16 %v246, %v246
  %v263 = vpack.c.b16 %v247, %v247
  %v264 = vpack.c.b16 %v248, %v248
  %v265 = vpack.c.b16 %v249, %v249
  %v266 = vpack.c.b16 %v250, %v250
  %v267 = vpack.c.b16 %v251, %v251
  %v268 = vpack.c.b16 %v252, %v252
  %v269 = vpack.c.b16 %v253, %v253
  %286 = vst [vmem:[%s2] sm:$0xf] %v254
  %287 = vst [vmem:[%s2 + $0x4] sm:$0xf] %v255
  %288 = vst [vmem:[%s2 + $0x8] sm:$0xf] %v256
  %289 = vst [vmem:[%s2 + $0xc] sm:$0xf] %v257
  %290 = vst [vmem:[%s2 + $0x10] sm:$0xf] %v258
  %291 = vst [vmem:[%s2 + $0x14] sm:$0xf] %v259
  %292 = vst [vmem:[%s2 + $0x18] sm:$0xf] %v260
  %293 = vst [vmem:[%s2 + $0x1c] sm:$0xf] %v261
  %294 = vst [vmem:[%s2 + $0x20] sm:$0xf] %v262
  %295 = vst [vmem:[%s2 + $0x24] sm:$0xf] %v263
  %296 = vst [vmem:[%s2 + $0x28] sm:$0xf] %v264
  %297 = vst [vmem:[%s2 + $0x2c] sm:$0xf] %v265
  %298 = vst [vmem:[%s2 + $0x30] sm:$0xf] %v266
  %299 = vst [vmem:[%s2 + $0x34] sm:$0xf] %v267
  %300 = vst [vmem:[%s2 + $0x38] sm:$0xf] %v268
  %301 = vst [vmem:[%s2 + $0x3c] sm:$0xf] %v269
  // Predicated region
  $region10: #{gcn_forward.4} parent=0 // pred_check
    _
  $region11: #{gcn_forward.4} parent=0 // pred_check_branch
    %303 = sbr.rel (0) target = $region13
  $region12: #{gcn_forward.4} parent=0 // pred_region
    _
  $region13: #{gcn_forward.4} parent=0 // pred_fallthru
    _
  // Predicated region
  $region14: #{gcn_forward.4} parent=0 // pred_check
    _
  $region15: #{gcn_forward.4} parent=0 // pred_check_branch
    %305 = sbr.rel (0) target = $region17
  $region16: #{gcn_forward.4} parent=0 // pred_region
    _
  $region17: #{gcn_forward.4} parent=0 // pred_fallthru
    _

// kernel: gcn_forward.6
$region0: #{gcn_forward.6}
  #allocation0 [shape = 'u32[]', space=smem, size = 0x4, offset = 0x4, fixed_abs, tag = 'smem constant byte address 0x4 - core index']
  #allocation1 [shape = 'u32[144,128]{1,0:T(1,128)}', space=vmem, size = 0x12000, scoped, tag = 'internal scratch']
  %s0 = inlined_call_operand.vmem [shape: f32[128,128], index: 0, kind: input, shape index: {}]
  %s1 = inlined_call_operand.vmem [shape: f32[128,128], index: 1, kind: input, shape index: {}]
  %s2 = inlined_call_operand.vmem [shape: bf16[128,128], index: 2, kind: output, shape index: {}]
  %s3 = sld [smem:[#allocation0]]
  $region18: #{gcn_forward.6} parent=0
    _
  %s5 = ssub.s32 1, %s3
  %s6 = scalar_select 0, %s5, %s3
  // Predicated region
  $region2: #{gcn_forward.6} parent=0 // pred_check
    _
  $region3: #{gcn_forward.6} parent=0 // pred_check_branch
    %8 = sbr.rel (0) target = $region5
  $region4: #{gcn_forward.6} parent=0 // pred_region
    _
  $region5: #{gcn_forward.6} parent=0 // pred_fallthru
    _
  // Predicated region
  $region6: #{gcn_forward.6} parent=0 // pred_check
    _
  $region7: #{gcn_forward.6} parent=0 // pred_check_branch
    %10 = sbr.rel (0) target = $region9
  $region8: #{gcn_forward.6} parent=0 // pred_region
    _
  $region9: #{gcn_forward.6} parent=0 // pred_fallthru
    _
  %v11 = vld [vmem:[%s0] sm:$0xff]
  %v12 = vld [vmem:[%s0 + $0x8] sm:$0xff]
  %v13 = vld [vmem:[%s0 + $0x10] sm:$0xff]
  %v14 = vld [vmem:[%s0 + $0x18] sm:$0xff]
  %v15 = vld [vmem:[%s0 + $0x20] sm:$0xff]
  %v16 = vld [vmem:[%s0 + $0x28] sm:$0xff]
  %v17 = vld [vmem:[%s0 + $0x30] sm:$0xff]
  %v18 = vld [vmem:[%s0 + $0x38] sm:$0xff]
  %v19 = vld [vmem:[%s0 + $0x40] sm:$0xff]
  %v20 = vld [vmem:[%s0 + $0x48] sm:$0xff]
  %v21 = vld [vmem:[%s0 + $0x50] sm:$0xff]
  %v22 = vld [vmem:[%s0 + $0x58] sm:$0xff]
  %v23 = vld [vmem:[%s0 + $0x60] sm:$0xff]
  %v24 = vld [vmem:[%s0 + $0x68] sm:$0xff]
  %v25 = vld [vmem:[%s0 + $0x70] sm:$0xff]
  %v26 = vld [vmem:[%s0 + $0x78] sm:$0xff]
  %v27 = vld [vmem:[%s1] sm:$0xff]
  %v28 = vld [vmem:[%s1 + $0x8] sm:$0xff]
  %v29 = vld [vmem:[%s1 + $0x10] sm:$0xff]
  %v30 = vld [vmem:[%s1 + $0x18] sm:$0xff]
  %v31 = vld [vmem:[%s1 + $0x20] sm:$0xff]
  %v32 = vld [vmem:[%s1 + $0x28] sm:$0xff]
  %v33 = vld [vmem:[%s1 + $0x30] sm:$0xff]
  %v34 = vld [vmem:[%s1 + $0x38] sm:$0xff]
  %v35 = vld [vmem:[%s1 + $0x40] sm:$0xff]
  %v36 = vld [vmem:[%s1 + $0x48] sm:$0xff]
  %v37 = vld [vmem:[%s1 + $0x50] sm:$0xff]
  %v38 = vld [vmem:[%s1 + $0x58] sm:$0xff]
  %v39 = vld [vmem:[%s1 + $0x60] sm:$0xff]
  %v40 = vld [vmem:[%s1 + $0x68] sm:$0xff]
  %v41 = vld [vmem:[%s1 + $0x70] sm:$0xff]
  %v42 = vld [vmem:[%s1 + $0x78] sm:$0xff]
  %43 = vmatprep.subr.mxu0 0.0
  %44 = vmatpush1.msra.mxu0 %v27
  %45 = vmatprep.subr.mxu0 0.0
  %46 = vmatpush1.msra.mxu0 %v28
  %47 = vmatprep.subr.mxu0 0.0
  %48 = vmatpush1.msra.mxu0 %v29
  %49 = vmatprep.subr.mxu0 0.0
  %50 = vmatpush1.msra.mxu0 %v30
  %51 = vmatprep.subr.mxu0 0.0
  %52 = vmatpush1.msra.mxu0 %v31
  %53 = vmatprep.subr.mxu0 0.0
  %54 = vmatpush1.msra.mxu0 %v32
  %55 = vmatprep.subr.mxu0 0.0
  %56 = vmatpush1.msra.mxu0 %v33
  %57 = vmatprep.subr.mxu0 0.0
  %58 = vmatpush1.msra.mxu0 %v34
  %59 = vmatprep.subr.mxu0 0.0
  %60 = vmatpush1.msra.mxu0 %v35
  %61 = vmatprep.subr.mxu0 0.0
  %62 = vmatpush1.msra.mxu0 %v36
  %63 = vmatprep.subr.mxu0 0.0
  %64 = vmatpush1.msra.mxu0 %v37
  %65 = vmatprep.subr.mxu0 0.0
  %66 = vmatpush1.msra.mxu0 %v38
  %67 = vmatprep.subr.mxu0 0.0
  %68 = vmatpush1.msra.mxu0 %v39
  %69 = vmatprep.subr.mxu0 0.0
  %70 = vmatpush1.msra.mxu0 %v40
  %71 = vmatprep.subr.mxu0 0.0
  %72 = vmatpush1.msra.mxu0 %v41
  %73 = vmatprep.subr.mxu0 0.0
  %74 = vmatpush1.msra.mxu0 %v42
  %75 = vmatprep.subr.mxu0 0.0
  %76 = vmatpush1.msra.mxu0 0.0
  %77 = vmatprep.subr.mxu0 0.0
  %78 = vmatpush1.msra.mxu0 0.0
  %79 = vmatprep.subr.mxu0 0.0
  %80 = vmatpush1.msra.mxu0 0.0
  %81 = vmatprep.subr.mxu0 0.0
  %82 = vmatpush1.msra.mxu0 0.0
  %83 = vmatprep.subr.mxu0 0.0
  %84 = vmatpush1.msra.mxu0 0.0
  %85 = vmatprep.subr.mxu0 0.0
  %86 = vmatpush1.msra.mxu0 0.0
  %87 = vmatprep.subr.mxu0 0.0
  %88 = vmatpush1.msra.mxu0 0.0
  %89 = vmatprep.subr.mxu0 0.0
  %90 = vmatpush1.msra.mxu0 0.0
  %91 = vmatprep.subr.mxu0 0.0
  %92 = vmatpush1.msra.mxu0 0.0
  %93 = vmatprep.subr.mxu0 0.0
  %94 = vmatpush1.msra.mxu0 0.0
  %95 = vmatprep.subr.mxu0 0.0
  %96 = vmatpush1.msra.mxu0 0.0
  %97 = vmatprep.subr.mxu0 0.0
  %98 = vmatpush1.msra.mxu0 0.0
  %99 = vmatprep.subr.mxu0 0.0
  %100 = vmatpush1.msra.mxu0 0.0
  %101 = vmatprep.subr.mxu0 0.0
  %102 = vmatpush1.msra.mxu0 0.0
  %103 = vmatprep.subr.mxu0 0.0
  %104 = vmatpush1.msra.mxu0 0.0
  %105 = vmatprep.subr.mxu0 0.0
  %106 = vmatpush1.msra.mxu0 0.0
  %107 = vmatprep.mubr.f32.mxu0 0.0
  %108 = vmatmul.mubr.f32.gmra.mrb[0].mxu0 %v11
  %v109 = vpop.f32.mrb[0].mxu0
  %v110 = vadd.f32 0.0, %v109
  %v111 = vpop.f32.mrb[0].mxu0
  %112 = vmatprep.mubr.f32.mxu0 0.0
  %113 = vmatmul.mubr.f32.gmra.mrb[0].mxu0 %v12
  %v114 = vpop.f32.mrb[0].mxu0
  %v115 = vadd.f32 0.0, %v114
  %v116 = vpop.f32.mrb[0].mxu0
  %117 = vmatprep.mubr.f32.mxu0 0.0
  %118 = vmatmul.mubr.f32.gmra.mrb[0].mxu0 %v13
  %v119 = vpop.f32.mrb[0].mxu0
  %v120 = vadd.f32 0.0, %v119
  %v121 = vpop.f32.mrb[0].mxu0
  %122 = vmatprep.mubr.f32.mxu0 0.0
  %123 = vmatmul.mubr.f32.gmra.mrb[0].mxu0 %v14
  %v124 = vpop.f32.mrb[0].mxu0
  %v125 = vadd.f32 0.0, %v124
  %v126 = vpop.f32.mrb[0].mxu0
  %127 = vmatprep.mubr.f32.mxu0 0.0
  %128 = vmatmul.mubr.f32.gmra.mrb[0].mxu0 %v15
  %v129 = vpop.f32.mrb[0].mxu0
  %v130 = vadd.f32 0.0, %v129
  %v131 = vpop.f32.mrb[0].mxu0
  %132 = vmatprep.mubr.f32.mxu0 0.0
  %133 = vmatmul.mubr.f32.gmra.mrb[0].mxu0 %v16
  %v134 = vpop.f32.mrb[0].mxu0
  %v135 = vadd.f32 0.0, %v134
  %v136 = vpop.f32.mrb[0].mxu0
  %137 = vmatprep.mubr.f32.mxu0 0.0
  %138 = vmatmul.mubr.f32.gmra.mrb[0].mxu0 %v17
  %v139 = vpop.f32.mrb[0].mxu0
  %v140 = vadd.f32 0.0, %v139
  %v141 = vpop.f32.mrb[0].mxu0
  %142 = vmatprep.mubr.f32.mxu0 0.0
  %143 = vmatmul.mubr.f32.gmra.mrb[0].mxu0 %v18
  %v144 = vpop.f32.mrb[0].mxu0
  %v145 = vadd.f32 0.0, %v144
  %v146 = vpop.f32.mrb[0].mxu0
  %147 = vmatprep.mubr.f32.mxu0 0.0
  %148 = vmatmul.mubr.f32.gmra.mrb[0].mxu0 %v19
  %v149 = vpop.f32.mrb[0].mxu0
  %v150 = vadd.f32 0.0, %v149
  %v151 = vpop.f32.mrb[0].mxu0
  %152 = vmatprep.mubr.f32.mxu0 0.0
  %153 = vmatmul.mubr.f32.gmra.mrb[0].mxu0 %v20
  %v154 = vpop.f32.mrb[0].mxu0
  %v155 = vadd.f32 0.0, %v154
  %v156 = vpop.f32.mrb[0].mxu0
  %157 = vmatprep.mubr.f32.mxu0 0.0
  %158 = vmatmul.mubr.f32.gmra.mrb[0].mxu0 %v21
  %v159 = vpop.f32.mrb[0].mxu0
  %v160 = vadd.f32 0.0, %v159
  %v161 = vpop.f32.mrb[0].mxu0
  %162 = vmatprep.mubr.f32.mxu0 0.0
  %163 = vmatmul.mubr.f32.gmra.mrb[0].mxu0 %v22
  %v164 = vpop.f32.mrb[0].mxu0
  %v165 = vadd.f32 0.0, %v164
  %v166 = vpop.f32.mrb[0].mxu0
  %167 = vmatprep.mubr.f32.mxu0 0.0
  %168 = vmatmul.mubr.f32.gmra.mrb[0].mxu0 %v23
  %v169 = vpop.f32.mrb[0].mxu0
  %v170 = vadd.f32 0.0, %v169
  %v171 = vpop.f32.mrb[0].mxu0
  %172 = vmatprep.mubr.f32.mxu0 0.0
  %173 = vmatmul.mubr.f32.gmra.mrb[0].mxu0 %v24
  %v174 = vpop.f32.mrb[0].mxu0
  %v175 = vadd.f32 0.0, %v174
  %v176 = vpop.f32.mrb[0].mxu0
  %177 = vmatprep.mubr.f32.mxu0 0.0
  %178 = vmatmul.mubr.f32.gmra.mrb[0].mxu0 %v25
  %v179 = vpop.f32.mrb[0].mxu0
  %v180 = vadd.f32 0.0, %v179
  %v181 = vpop.f32.mrb[0].mxu0
  %182 = vmatprep.mubr.f32.mxu0 0.0
  %183 = vmatmul.mubr.f32.gmra.mrb[0].mxu0 %v26
  %v184 = vpop.f32.mrb[0].mxu0
  %v185 = vadd.f32 0.0, %v184
  %v186 = vpop.f32.mrb[0].mxu0
  %187 = vdwg.mxu0
  %v188 = vpack.c.bf16 %v115, %v110
  %v189 = vpack.c.bf16 %v125, %v120
  %v190 = vpack.c.bf16 %v135, %v130
  %v191 = vpack.c.bf16 %v145, %v140
  %v192 = vpack.c.bf16 %v155, %v150
  %v193 = vpack.c.bf16 %v165, %v160
  %v194 = vpack.c.bf16 %v175, %v170
  %v195 = vpack.c.bf16 %v185, %v180
  %v204 = vunpack.c.l.b16 %v188
  %v205 = vunpack.c.h.b16 %v188
  %v206 = vunpack.c.l.b16 %v189
  %v207 = vunpack.c.h.b16 %v189
  %v208 = vunpack.c.l.b16 %v190
  %v209 = vunpack.c.h.b16 %v190
  %v210 = vunpack.c.l.b16 %v191
  %v211 = vunpack.c.h.b16 %v191
  %v212 = vunpack.c.l.b16 %v192
  %v213 = vunpack.c.h.b16 %v192
  %v214 = vunpack.c.l.b16 %v193
  %v215 = vunpack.c.h.b16 %v193
  %v216 = vunpack.c.l.b16 %v194
  %v217 = vunpack.c.h.b16 %v194
  %v218 = vunpack.c.l.b16 %v195
  %v219 = vunpack.c.h.b16 %v195
  %v220 = vpack.c.b16 %v204, %v204
  %v221 = vpack.c.b16 %v205, %v205
  %v222 = vpack.c.b16 %v206, %v206
  %v223 = vpack.c.b16 %v207, %v207
  %v224 = vpack.c.b16 %v208, %v208
  %v225 = vpack.c.b16 %v209, %v209
  %v226 = vpack.c.b16 %v210, %v210
  %v227 = vpack.c.b16 %v211, %v211
  %v228 = vpack.c.b16 %v212, %v212
  %v229 = vpack.c.b16 %v213, %v213
  %v230 = vpack.c.b16 %v214, %v214
  %v231 = vpack.c.b16 %v215, %v215
  %v232 = vpack.c.b16 %v216, %v216
  %v233 = vpack.c.b16 %v217, %v217
  %v234 = vpack.c.b16 %v218, %v218
  %v235 = vpack.c.b16 %v219, %v219
  %252 = vst [vmem:[%s2] sm:$0xf] %v220
  %253 = vst [vmem:[%s2 + $0x4] sm:$0xf] %v221
  %254 = vst [vmem:[%s2 + $0x8] sm:$0xf] %v222
  %255 = vst [vmem:[%s2 + $0xc] sm:$0xf] %v223
  %256 = vst [vmem:[%s2 + $0x10] sm:$0xf] %v224
  %257 = vst [vmem:[%s2 + $0x14] sm:$0xf] %v225
  %258 = vst [vmem:[%s2 + $0x18] sm:$0xf] %v226
  %259 = vst [vmem:[%s2 + $0x1c] sm:$0xf] %v227
  %260 = vst [vmem:[%s2 + $0x20] sm:$0xf] %v228
  %261 = vst [vmem:[%s2 + $0x24] sm:$0xf] %v229
  %262 = vst [vmem:[%s2 + $0x28] sm:$0xf] %v230
  %263 = vst [vmem:[%s2 + $0x2c] sm:$0xf] %v231
  %264 = vst [vmem:[%s2 + $0x30] sm:$0xf] %v232
  %265 = vst [vmem:[%s2 + $0x34] sm:$0xf] %v233
  %266 = vst [vmem:[%s2 + $0x38] sm:$0xf] %v234
  %267 = vst [vmem:[%s2 + $0x3c] sm:$0xf] %v235
  // Predicated region
  $region10: #{gcn_forward.6} parent=0 // pred_check
    _
  $region11: #{gcn_forward.6} parent=0 // pred_check_branch
    %269 = sbr.rel (0) target = $region13
  $region12: #{gcn_forward.6} parent=0 // pred_region
    _
  $region13: #{gcn_forward.6} parent=0 // pred_fallthru
    _
  // Predicated region
  $region14: #{gcn_forward.6} parent=0 // pred_check
    _
  $region15: #{gcn_forward.6} parent=0 // pred_check_branch
    %271 = sbr.rel (0) target = $region17
  $region16: #{gcn_forward.6} parent=0 // pred_region
    _
  $region17: #{gcn_forward.6} parent=0 // pred_fallthru
    _

// kernel: gcn_forward.5
$region0: #{gcn_forward.5}
  #allocation0 [shape = 'u32[]', space=smem, size = 0x4, offset = 0x4, fixed_abs, tag = 'smem constant byte address 0x4 - core index']
  #allocation1 [shape = 'u32[144,128]{1,0:T(1,128)}', space=vmem, size = 0x12000, scoped, tag = 'internal scratch']
  #allocation2 [shape = 'f32[128,128]{1,0:T(8,128)}', space=vmem, size = 0x10000, scoped, tag = 'scratch operand']
  %s0 = inlined_call_operand.vmem [shape: bf16[128,128], index: 0, kind: input, shape index: {}]
  %s1 = inlined_call_operand.vmem [shape: bf16[128,128], index: 1, kind: input, shape index: {}]
  %s2 = inlined_call_operand.vmem [shape: f32[1,128], index: 2, kind: input, shape index: {}]
  %s3 = inlined_call_operand.vmem [shape: f32[128,128], index: 3, kind: output, shape index: {}]
  %s4 = sld [smem:[#allocation0]]
  $region30: #{gcn_forward.5} parent=0
    _
  %s6 = ssub.s32 1, %s4
  %s7 = scalar_select 0, %s6, %s4
  // Predicated region
  $region2: #{gcn_forward.5} parent=0 // pred_check
    _
  $region3: #{gcn_forward.5} parent=0 // pred_check_branch
    %9 = sbr.rel (0) target = $region5
  $region4: #{gcn_forward.5} parent=0 // pred_region
    _
  $region5: #{gcn_forward.5} parent=0 // pred_fallthru
    _
  // Predicated region
  $region6: #{gcn_forward.5} parent=0 // pred_check
    _
  $region7: #{gcn_forward.5} parent=0 // pred_check_branch
    %11 = sbr.rel (0) target = $region9
  $region8: #{gcn_forward.5} parent=0 // pred_region
    _
  $region9: #{gcn_forward.5} parent=0 // pred_fallthru
    _
  // Predicated region
  $region10: #{gcn_forward.5} parent=0 // pred_check
    _
  $region11: #{gcn_forward.5} parent=0 // pred_check_branch
    %13 = sbr.rel (0) target = $region13
  $region12: #{gcn_forward.5} parent=0 // pred_region
    _
  $region13: #{gcn_forward.5} parent=0 // pred_fallthru
    _
  %p15 = scmp.eq.s32.totalorder 0, 0
  // Predicated region
  $region14: #{gcn_forward.5} parent=0 // pred_check
    %p16 = pneg %p15
  $region15: #{gcn_forward.5} parent=0 // pred_check_branch
    %18 = sbr.rel (%p16) target = $region17
  $region16: #{gcn_forward.5} parent=0 // pred_region
    %19 = vst [vmem:[#allocation2] sm:$0xff] 0.0
    %20 = vst [vmem:[#allocation2 + $0x8] sm:$0xff] 0.0
    %21 = vst [vmem:[#allocation2 + $0x10] sm:$0xff] 0.0
    %22 = vst [vmem:[#allocation2 + $0x18] sm:$0xff] 0.0
    %23 = vst [vmem:[#allocation2 + $0x20] sm:$0xff] 0.0
    %24 = vst [vmem:[#allocation2 + $0x28] sm:$0xff] 0.0
    %25 = vst [vmem:[#allocation2 + $0x30] sm:$0xff] 0.0
    %26 = vst [vmem:[#allocation2 + $0x38] sm:$0xff] 0.0
    %27 = vst [vmem:[#allocation2 + $0x40] sm:$0xff] 0.0
    %28 = vst [vmem:[#allocation2 + $0x48] sm:$0xff] 0.0
    %29 = vst [vmem:[#allocation2 + $0x50] sm:$0xff] 0.0
    %30 = vst [vmem:[#allocation2 + $0x58] sm:$0xff] 0.0
    %31 = vst [vmem:[#allocation2 + $0x60] sm:$0xff] 0.0
    %32 = vst [vmem:[#allocation2 + $0x68] sm:$0xff] 0.0
    %33 = vst [vmem:[#allocation2 + $0x70] sm:$0xff] 0.0
    %34 = vst [vmem:[#allocation2 + $0x78] sm:$0xff] 0.0
  $region17: #{gcn_forward.5} parent=0 // pred_fallthru
    _
  %s35 = smul.u32 0, 128
  %s36 = sshra.s32 %s35, 3
  %s37 = sand.u32 %s35, 7
  %s38 = smul.addr %s36, 4
  %s39 = scalar_lea.vmem %s1, %s38
  %v40 = vld [vmem:[%s39] sm:$0xf]
  %v41 = vld [vmem:[%s39 + $0x4] sm:$0xf]
  %v42 = vld [vmem:[%s39 + $0x8] sm:$0xf]
  %v43 = vld [vmem:[%s39 + $0xc] sm:$0xf]
  %v44 = vld [vmem:[%s39 + $0x10] sm:$0xf]
  %v45 = vld [vmem:[%s39 + $0x14] sm:$0xf]
  %v46 = vld [vmem:[%s39 + $0x18] sm:$0xf]
  %v47 = vld [vmem:[%s39 + $0x1c] sm:$0xf]
  %v48 = vld [vmem:[%s39 + $0x20] sm:$0xf]
  %v49 = vld [vmem:[%s39 + $0x24] sm:$0xf]
  %v50 = vld [vmem:[%s39 + $0x28] sm:$0xf]
  %v51 = vld [vmem:[%s39 + $0x2c] sm:$0xf]
  %v52 = vld [vmem:[%s39 + $0x30] sm:$0xf]
  %v53 = vld [vmem:[%s39 + $0x34] sm:$0xf]
  %v54 = vld [vmem:[%s39 + $0x38] sm:$0xf]
  %v55 = vld [vmem:[%s39 + $0x3c] sm:$0xf]
  %v56 = vld [vmem:[#allocation2] sm:$0xff]
  %v57 = vld [vmem:[#allocation2 + $0x8] sm:$0xff]
  %v58 = vld [vmem:[#allocation2 + $0x10] sm:$0xff]
  %v59 = vld [vmem:[#allocation2 + $0x18] sm:$0xff]
  %v60 = vld [vmem:[#allocation2 + $0x20] sm:$0xff]
  %v61 = vld [vmem:[#allocation2 + $0x28] sm:$0xff]
  %v62 = vld [vmem:[#allocation2 + $0x30] sm:$0xff]
  %v63 = vld [vmem:[#allocation2 + $0x38] sm:$0xff]
  %v64 = vld [vmem:[#allocation2 + $0x40] sm:$0xff]
  %v65 = vld [vmem:[#allocation2 + $0x48] sm:$0xff]
  %v66 = vld [vmem:[#allocation2 + $0x50] sm:$0xff]
  %v67 = vld [vmem:[#allocation2 + $0x58] sm:$0xff]
  %v68 = vld [vmem:[#allocation2 + $0x60] sm:$0xff]
  %v69 = vld [vmem:[#allocation2 + $0x68] sm:$0xff]
  %v70 = vld [vmem:[#allocation2 + $0x70] sm:$0xff]
  %v71 = vld [vmem:[#allocation2 + $0x78] sm:$0xff]
  %v72 = vld [vmem:[%s0] sm:$0xf]
  %v73 = vld [vmem:[%s0 + $0x4] sm:$0xf]
  %v74 = vld [vmem:[%s0 + $0x8] sm:$0xf]
  %v75 = vld [vmem:[%s0 + $0xc] sm:$0xf]
  %v76 = vld [vmem:[%s0 + $0x10] sm:$0xf]
  %v77 = vld [vmem:[%s0 + $0x14] sm:$0xf]
  %v78 = vld [vmem:[%s0 + $0x18] sm:$0xf]
  %v79 = vld [vmem:[%s0 + $0x1c] sm:$0xf]
  %v80 = vld [vmem:[%s0 + $0x20] sm:$0xf]
  %v81 = vld [vmem:[%s0 + $0x24] sm:$0xf]
  %v82 = vld [vmem:[%s0 + $0x28] sm:$0xf]
  %v83 = vld [vmem:[%s0 + $0x2c] sm:$0xf]
  %v84 = vld [vmem:[%s0 + $0x30] sm:$0xf]
  %v85 = vld [vmem:[%s0 + $0x34] sm:$0xf]
  %v86 = vld [vmem:[%s0 + $0x38] sm:$0xf]
  %v87 = vld [vmem:[%s0 + $0x3c] sm:$0xf]
  %v104 = vunpack.c.l.b16 %v72
  %v105 = vunpack.c.l.b16 %v73
  %v106 = vunpack.c.l.b16 %v74
  %v107 = vunpack.c.l.b16 %v75
  %v108 = vunpack.c.l.b16 %v76
  %v109 = vunpack.c.l.b16 %v77
  %v110 = vunpack.c.l.b16 %v78
  %v111 = vunpack.c.l.b16 %v79
  %v112 = vunpack.c.l.b16 %v80
  %v113 = vunpack.c.l.b16 %v81
  %v114 = vunpack.c.l.b16 %v82
  %v115 = vunpack.c.l.b16 %v83
  %v116 = vunpack.c.l.b16 %v84
  %v117 = vunpack.c.l.b16 %v85
  %v118 = vunpack.c.l.b16 %v86
  %v119 = vunpack.c.l.b16 %v87
  %v120 = vpack.c.b16 %v105, %v104
  %v121 = vpack.c.b16 %v107, %v106
  %v122 = vpack.c.b16 %v109, %v108
  %v123 = vpack.c.b16 %v111, %v110
  %v124 = vpack.c.b16 %v113, %v112
  %v125 = vpack.c.b16 %v115, %v114
  %v126 = vpack.c.b16 %v117, %v116
  %v127 = vpack.c.b16 %v119, %v118
  %v152 = vunpack.c.l.b16 %v40
  %v153 = vunpack.c.l.b16 %v41
  %v154 = vunpack.c.l.b16 %v42
  %v155 = vunpack.c.l.b16 %v43
  %v156 = vunpack.c.l.b16 %v44
  %v157 = vunpack.c.l.b16 %v45
  %v158 = vunpack.c.l.b16 %v46
  %v159 = vunpack.c.l.b16 %v47
  %v160 = vunpack.c.l.b16 %v48
  %v161 = vunpack.c.l.b16 %v49
  %v162 = vunpack.c.l.b16 %v50
  %v163 = vunpack.c.l.b16 %v51
  %v164 = vunpack.c.l.b16 %v52
  %v165 = vunpack.c.l.b16 %v53
  %v166 = vunpack.c.l.b16 %v54
  %v167 = vunpack.c.l.b16 %v55
  %v168 = vpack.c.b16 %v153, %v152
  %v169 = vpack.c.b16 %v155, %v154
  %v170 = vpack.c.b16 %v157, %v156
  %v171 = vpack.c.b16 %v159, %v158
  %v172 = vpack.c.b16 %v161, %v160
  %v173 = vpack.c.b16 %v163, %v162
  %v174 = vpack.c.b16 %v165, %v164
  %v175 = vpack.c.b16 %v167, %v166
  %184 = vmatprep.subr.bf16.mxu0 0
  %185 = vmatpush1.bf16.msra.mxu0 %v168
  %186 = vmatprep.subr.bf16.mxu0 0
  %187 = vmatpush1.bf16.msra.mxu0 %v169
  %188 = vmatprep.subr.bf16.mxu0 0
  %189 = vmatpush1.bf16.msra.mxu0 %v170
  %190 = vmatprep.subr.bf16.mxu0 0
  %191 = vmatpush1.bf16.msra.mxu0 %v171
  %192 = vmatprep.subr.bf16.mxu0 0
  %193 = vmatpush1.bf16.msra.mxu0 %v172
  %194 = vmatprep.subr.bf16.mxu0 0
  %195 = vmatpush1.bf16.msra.mxu0 %v173
  %196 = vmatprep.subr.bf16.mxu0 0
  %197 = vmatpush1.bf16.msra.mxu0 %v174
  %198 = vmatprep.subr.bf16.mxu0 0
  %199 = vmatpush1.bf16.msra.mxu0 %v175
  %200 = vmatprep.subr.bf16.mxu0 0
  %201 = vmatpush1.bf16.msra.mxu0 0
  %202 = vmatprep.subr.bf16.mxu0 0
  %203 = vmatpush1.bf16.msra.mxu0 0
  %204 = vmatprep.subr.bf16.mxu0 0
  %205 = vmatpush1.bf16.msra.mxu0 0
  %206 = vmatprep.subr.bf16.mxu0 0
  %207 = vmatpush1.bf16.msra.mxu0 0
  %208 = vmatprep.subr.bf16.mxu0 0
  %209 = vmatpush1.bf16.msra.mxu0 0
  %210 = vmatprep.subr.bf16.mxu0 0
  %211 = vmatpush1.bf16.msra.mxu0 0
  %212 = vmatprep.subr.bf16.mxu0 0
  %213 = vmatpush1.bf16.msra.mxu0 0
  %214 = vmatprep.subr.bf16.mxu0 0
  %215 = vmatpush1.bf16.msra.mxu0 0
  %216 = vmatprep.mubr.bf16.mxu0 0
  %217 = vmatmul.mubr.bf16.gmra.mrb[0].mxu0 %v120
  %v218 = vpop.f32.mrb[0].mxu0
  %v219 = vadd.f32 0.0, %v218
  %v220 = vpop.f32.mrb[0].mxu0
  %v221 = vpop.f32.mrb[0].mxu0
  %v222 = vadd.f32 0.0, %v221
  %v223 = vpop.f32.mrb[0].mxu0
  %224 = vmatprep.mubr.bf16.mxu0 0
  %225 = vmatmul.mubr.bf16.gmra.mrb[0].mxu0 %v121
  %v226 = vpop.f32.mrb[0].mxu0
  %v227 = vadd.f32 0.0, %v226
  %v228 = vpop.f32.mrb[0].mxu0
  %v229 = vpop.f32.mrb[0].mxu0
  %v230 = vadd.f32 0.0, %v229
  %v231 = vpop.f32.mrb[0].mxu0
  %232 = vmatprep.mubr.bf16.mxu0 0
  %233 = vmatmul.mubr.bf16.gmra.mrb[0].mxu0 %v122
  %v234 = vpop.f32.mrb[0].mxu0
  %v235 = vadd.f32 0.0, %v234
  %v236 = vpop.f32.mrb[0].mxu0
  %v237 = vpop.f32.mrb[0].mxu0
  %v238 = vadd.f32 0.0, %v237
  %v239 = vpop.f32.mrb[0].mxu0
  %240 = vmatprep.mubr.bf16.mxu0 0
  %241 = vmatmul.mubr.bf16.gmra.mrb[0].mxu0 %v123
  %v242 = vpop.f32.mrb[0].mxu0
  %v243 = vadd.f32 0.0, %v242
  %v244 = vpop.f32.mrb[0].mxu0
  %v245 = vpop.f32.mrb[0].mxu0
  %v246 = vadd.f32 0.0, %v245
  %v247 = vpop.f32.mrb[0].mxu0
  %248 = vmatprep.mubr.bf16.mxu0 0
  %249 = vmatmul.mubr.bf16.gmra.mrb[0].mxu0 %v124
  %v250 = vpop.f32.mrb[0].mxu0
  %v251 = vadd.f32 0.0, %v250
  %v252 = vpop.f32.mrb[0].mxu0
  %v253 = vpop.f32.mrb[0].mxu0
  %v254 = vadd.f32 0.0, %v253
  %v255 = vpop.f32.mrb[0].mxu0
  %256 = vmatprep.mubr.bf16.mxu0 0
  %257 = vmatmul.mubr.bf16.gmra.mrb[0].mxu0 %v125
  %v258 = vpop.f32.mrb[0].mxu0
  %v259 = vadd.f32 0.0, %v258
  %v260 = vpop.f32.mrb[0].mxu0
  %v261 = vpop.f32.mrb[0].mxu0
  %v262 = vadd.f32 0.0, %v261
  %v263 = vpop.f32.mrb[0].mxu0
  %264 = vmatprep.mubr.bf16.mxu0 0
  %265 = vmatmul.mubr.bf16.gmra.mrb[0].mxu0 %v126
  %v266 = vpop.f32.mrb[0].mxu0
  %v267 = vadd.f32 0.0, %v266
  %v268 = vpop.f32.mrb[0].mxu0
  %v269 = vpop.f32.mrb[0].mxu0
  %v270 = vadd.f32 0.0, %v269
  %v271 = vpop.f32.mrb[0].mxu0
  %272 = vmatprep.mubr.bf16.mxu0 0
  %273 = vmatmul.mubr.bf16.gmra.mrb[0].mxu0 %v127
  %v274 = vpop.f32.mrb[0].mxu0
  %v275 = vadd.f32 0.0, %v274
  %v276 = vpop.f32.mrb[0].mxu0
  %v277 = vpop.f32.mrb[0].mxu0
  %v278 = vadd.f32 0.0, %v277
  %v279 = vpop.f32.mrb[0].mxu0
  %280 = vdwg.mxu0
  %v281 = vadd.f32 %v56, %v219
  %v282 = vadd.f32 %v57, %v222
  %v283 = vadd.f32 %v58, %v227
  %v284 = vadd.f32 %v59, %v230
  %v285 = vadd.f32 %v60, %v235
  %v286 = vadd.f32 %v61, %v238
  %v287 = vadd.f32 %v62, %v243
  %v288 = vadd.f32 %v63, %v246
  %v289 = vadd.f32 %v64, %v251
  %v290 = vadd.f32 %v65, %v254
  %v291 = vadd.f32 %v66, %v259
  %v292 = vadd.f32 %v67, %v262
  %v293 = vadd.f32 %v68, %v267
  %v294 = vadd.f32 %v69, %v270
  %v295 = vadd.f32 %v70, %v275
  %v296 = vadd.f32 %v71, %v278
  %297 = vst [vmem:[#allocation2] sm:$0xff] %v281
  %298 = vst [vmem:[#allocation2 + $0x8] sm:$0xff] %v282
  %299 = vst [vmem:[#allocation2 + $0x10] sm:$0xff] %v283
  %300 = vst [vmem:[#allocation2 + $0x18] sm:$0xff] %v284
  %301 = vst [vmem:[#allocation2 + $0x20] sm:$0xff] %v285
  %302 = vst [vmem:[#allocation2 + $0x28] sm:$0xff] %v286
  %303 = vst [vmem:[#allocation2 + $0x30] sm:$0xff] %v287
  %304 = vst [vmem:[#allocation2 + $0x38] sm:$0xff] %v288
  %305 = vst [vmem:[#allocation2 + $0x40] sm:$0xff] %v289
  %306 = vst [vmem:[#allocation2 + $0x48] sm:$0xff] %v290
  %307 = vst [vmem:[#allocation2 + $0x50] sm:$0xff] %v291
  %308 = vst [vmem:[#allocation2 + $0x58] sm:$0xff] %v292
  %309 = vst [vmem:[#allocation2 + $0x60] sm:$0xff] %v293
  %310 = vst [vmem:[#allocation2 + $0x68] sm:$0xff] %v294
  %311 = vst [vmem:[#allocation2 + $0x70] sm:$0xff] %v295
  %312 = vst [vmem:[#allocation2 + $0x78] sm:$0xff] %v296
  // Predicated region
  $region18: #{gcn_forward.5} parent=0 // pred_check
    %p313 = pneg %p15
  $region19: #{gcn_forward.5} parent=0 // pred_check_branch
    %315 = sbr.rel (%p313) target = $region21
  $region20: #{gcn_forward.5} parent=0 // pred_region
    %v316 = vld [vmem:[#allocation2] sm:$0xff]
    %v317 = vld [vmem:[#allocation2 + $0x8] sm:$0xff]
    %v318 = vld [vmem:[#allocation2 + $0x10] sm:$0xff]
    %v319 = vld [vmem:[#allocation2 + $0x18] sm:$0xff]
    %v320 = vld [vmem:[#allocation2 + $0x20] sm:$0xff]
    %v321 = vld [vmem:[#allocation2 + $0x28] sm:$0xff]
    %v322 = vld [vmem:[#allocation2 + $0x30] sm:$0xff]
    %v323 = vld [vmem:[#allocation2 + $0x38] sm:$0xff]
    %v324 = vld [vmem:[#allocation2 + $0x40] sm:$0xff]
    %v325 = vld [vmem:[#allocation2 + $0x48] sm:$0xff]
    %v326 = vld [vmem:[#allocation2 + $0x50] sm:$0xff]
    %v327 = vld [vmem:[#allocation2 + $0x58] sm:$0xff]
    %v328 = vld [vmem:[#allocation2 + $0x60] sm:$0xff]
    %v329 = vld [vmem:[#allocation2 + $0x68] sm:$0xff]
    %v330 = vld [vmem:[#allocation2 + $0x70] sm:$0xff]
    %v331 = vld [vmem:[#allocation2 + $0x78] sm:$0xff]
    %v332 = vld [vmem:[%s2] sm:$0x1]
    %v334 = vlaneseq
    %v335 = vshrl.u32 %v334, 7
    %v336 = vsub.s32 0, %v335
    %v337 = vrot.slane %v332, %v336
    %v339 = vadd.f32 %v316, %v337
    %v340 = vadd.f32 %v317, %v337
    %v341 = vadd.f32 %v318, %v337
    %v342 = vadd.f32 %v319, %v337
    %v343 = vadd.f32 %v320, %v337
    %v344 = vadd.f32 %v321, %v337
    %v345 = vadd.f32 %v322, %v337
    %v346 = vadd.f32 %v323, %v337
    %v347 = vadd.f32 %v324, %v337
    %v348 = vadd.f32 %v325, %v337
    %v349 = vadd.f32 %v326, %v337
    %v350 = vadd.f32 %v327, %v337
    %v351 = vadd.f32 %v328, %v337
    %v352 = vadd.f32 %v329, %v337
    %v353 = vadd.f32 %v330, %v337
    %v354 = vadd.f32 %v331, %v337
    %v355 = vmax.f32 %v339, 0.0
    %v356 = vmax.f32 %v340, 0.0
    %v357 = vmax.f32 %v341, 0.0
    %v358 = vmax.f32 %v342, 0.0
    %v359 = vmax.f32 %v343, 0.0
    %v360 = vmax.f32 %v344, 0.0
    %v361 = vmax.f32 %v345, 0.0
    %v362 = vmax.f32 %v346, 0.0
    %v363 = vmax.f32 %v347, 0.0
    %v364 = vmax.f32 %v348, 0.0
    %v365 = vmax.f32 %v349, 0.0
    %v366 = vmax.f32 %v350, 0.0
    %v367 = vmax.f32 %v351, 0.0
    %v368 = vmax.f32 %v352, 0.0
    %v369 = vmax.f32 %v353, 0.0
    %v370 = vmax.f32 %v354, 0.0
    %371 = vst [vmem:[%s3] sm:$0xff] %v355
    %372 = vst [vmem:[%s3 + $0x8] sm:$0xff] %v356
    %373 = vst [vmem:[%s3 + $0x10] sm:$0xff] %v357
    %374 = vst [vmem:[%s3 + $0x18] sm:$0xff] %v358
    %375 = vst [vmem:[%s3 + $0x20] sm:$0xff] %v359
    %376 = vst [vmem:[%s3 + $0x28] sm:$0xff] %v360
    %377 = vst [vmem:[%s3 + $0x30] sm:$0xff] %v361
    %378 = vst [vmem:[%s3 + $0x38] sm:$0xff] %v362
    %379 = vst [vmem:[%s3 + $0x40] sm:$0xff] %v363
    %380 = vst [vmem:[%s3 + $0x48] sm:$0xff] %v364
    %381 = vst [vmem:[%s3 + $0x50] sm:$0xff] %v365
    %382 = vst [vmem:[%s3 + $0x58] sm:$0xff] %v366
    %383 = vst [vmem:[%s3 + $0x60] sm:$0xff] %v367
    %384 = vst [vmem:[%s3 + $0x68] sm:$0xff] %v368
    %385 = vst [vmem:[%s3 + $0x70] sm:$0xff] %v369
    %386 = vst [vmem:[%s3 + $0x78] sm:$0xff] %v370
  $region21: #{gcn_forward.5} parent=0 // pred_fallthru
    _
  // Predicated region
  $region22: #{gcn_forward.5} parent=0 // pred_check
    _
  $region23: #{gcn_forward.5} parent=0 // pred_check_branch
    %388 = sbr.rel (0) target = $region25
  $region24: #{gcn_forward.5} parent=0 // pred_region
    _
  $region25: #{gcn_forward.5} parent=0 // pred_fallthru
    _
  // Predicated region
  $region26: #{gcn_forward.5} parent=0 // pred_check
    _
  $region27: #{gcn_forward.5} parent=0 // pred_check_branch
    %390 = sbr.rel (0) target = $region29
  $region28: #{gcn_forward.5} parent=0 // pred_region
    _
  $region29: #{gcn_forward.5} parent=0 // pred_fallthru
    _

// kernel: gcn_forward.7
$region0: #{gcn_forward.7}
  #allocation0 [shape = 'u32[]', space=smem, size = 0x4, offset = 0x4, fixed_abs, tag = 'smem constant byte address 0x4 - core index']
  #allocation1 [shape = 'u32[144,128]{1,0:T(1,128)}', space=vmem, size = 0x12000, scoped, tag = 'internal scratch']
  #allocation2 [shape = 'f32[128,128]{1,0:T(8,128)}', space=vmem, size = 0x10000, scoped, tag = 'scratch operand']
  %s0 = inlined_call_operand.vmem [shape: bf16[128,128], index: 0, kind: input, shape index: {}]
  %s1 = inlined_call_operand.vmem [shape: bf16[128,128], index: 1, kind: input, shape index: {}]
  %s2 = inlined_call_operand.vmem [shape: f32[1,128], index: 2, kind: input, shape index: {}]
  %s3 = inlined_call_operand.vmem [shape: f32[128,128], index: 3, kind: output, shape index: {0}]
  %s4 = inlined_call_operand.vmem [shape: f32[128,128], index: 4, kind: output, shape index: {1}]
  %5 = xla_tuple %s3, %s4
  %s6 = sld [smem:[#allocation0]]
  $region38: #{gcn_forward.7} parent=0
    _
  %s8 = ssub.s32 1, %s6
  %s9 = scalar_select 0, %s8, %s6
  // Predicated region
  $region2: #{gcn_forward.7} parent=0 // pred_check
    _
  $region3: #{gcn_forward.7} parent=0 // pred_check_branch
    %11 = sbr.rel (0) target = $region5
  $region4: #{gcn_forward.7} parent=0 // pred_region
    _
  $region5: #{gcn_forward.7} parent=0 // pred_fallthru
    _
  // Predicated region
  $region6: #{gcn_forward.7} parent=0 // pred_check
    _
  $region7: #{gcn_forward.7} parent=0 // pred_check_branch
    %13 = sbr.rel (0) target = $region9
  $region8: #{gcn_forward.7} parent=0 // pred_region
    _
  $region9: #{gcn_forward.7} parent=0 // pred_fallthru
    _
  // Predicated region
  $region10: #{gcn_forward.7} parent=0 // pred_check
    _
  $region11: #{gcn_forward.7} parent=0 // pred_check_branch
    %15 = sbr.rel (0) target = $region13
  $region12: #{gcn_forward.7} parent=0 // pred_region
    _
  $region13: #{gcn_forward.7} parent=0 // pred_fallthru
    _
  %p17 = scmp.eq.s32.totalorder 0, 0
  // Predicated region
  $region14: #{gcn_forward.7} parent=0 // pred_check
    %p18 = pneg %p17
  $region15: #{gcn_forward.7} parent=0 // pred_check_branch
    %20 = sbr.rel (%p18) target = $region17
  $region16: #{gcn_forward.7} parent=0 // pred_region
    %21 = vst [vmem:[#allocation2] sm:$0xff] 0.0
    %22 = vst [vmem:[#allocation2 + $0x8] sm:$0xff] 0.0
    %23 = vst [vmem:[#allocation2 + $0x10] sm:$0xff] 0.0
    %24 = vst [vmem:[#allocation2 + $0x18] sm:$0xff] 0.0
    %25 = vst [vmem:[#allocation2 + $0x20] sm:$0xff] 0.0
    %26 = vst [vmem:[#allocation2 + $0x28] sm:$0xff] 0.0
    %27 = vst [vmem:[#allocation2 + $0x30] sm:$0xff] 0.0
    %28 = vst [vmem:[#allocation2 + $0x38] sm:$0xff] 0.0
    %29 = vst [vmem:[#allocation2 + $0x40] sm:$0xff] 0.0
    %30 = vst [vmem:[#allocation2 + $0x48] sm:$0xff] 0.0
    %31 = vst [vmem:[#allocation2 + $0x50] sm:$0xff] 0.0
    %32 = vst [vmem:[#allocation2 + $0x58] sm:$0xff] 0.0
    %33 = vst [vmem:[#allocation2 + $0x60] sm:$0xff] 0.0
    %34 = vst [vmem:[#allocation2 + $0x68] sm:$0xff] 0.0
    %35 = vst [vmem:[#allocation2 + $0x70] sm:$0xff] 0.0
    %36 = vst [vmem:[#allocation2 + $0x78] sm:$0xff] 0.0
  $region17: #{gcn_forward.7} parent=0 // pred_fallthru
    _
  %s37 = smul.u32 0, 128
  %s38 = sshra.s32 %s37, 3
  %s39 = sand.u32 %s37, 7
  %s40 = smul.addr %s38, 4
  %s41 = scalar_lea.vmem %s1, %s40
  %v42 = vld [vmem:[%s41] sm:$0xf]
  %v43 = vld [vmem:[%s41 + $0x4] sm:$0xf]
  %v44 = vld [vmem:[%s41 + $0x8] sm:$0xf]
  %v45 = vld [vmem:[%s41 + $0xc] sm:$0xf]
  %v46 = vld [vmem:[%s41 + $0x10] sm:$0xf]
  %v47 = vld [vmem:[%s41 + $0x14] sm:$0xf]
  %v48 = vld [vmem:[%s41 + $0x18] sm:$0xf]
  %v49 = vld [vmem:[%s41 + $0x1c] sm:$0xf]
  %v50 = vld [vmem:[%s41 + $0x20] sm:$0xf]
  %v51 = vld [vmem:[%s41 + $0x24] sm:$0xf]
  %v52 = vld [vmem:[%s41 + $0x28] sm:$0xf]
  %v53 = vld [vmem:[%s41 + $0x2c] sm:$0xf]
  %v54 = vld [vmem:[%s41 + $0x30] sm:$0xf]
  %v55 = vld [vmem:[%s41 + $0x34] sm:$0xf]
  %v56 = vld [vmem:[%s41 + $0x38] sm:$0xf]
  %v57 = vld [vmem:[%s41 + $0x3c] sm:$0xf]
  %v58 = vld [vmem:[#allocation2] sm:$0xff]
  %v59 = vld [vmem:[#allocation2 + $0x8] sm:$0xff]
  %v60 = vld [vmem:[#allocation2 + $0x10] sm:$0xff]
  %v61 = vld [vmem:[#allocation2 + $0x18] sm:$0xff]
  %v62 = vld [vmem:[#allocation2 + $0x20] sm:$0xff]
  %v63 = vld [vmem:[#allocation2 + $0x28] sm:$0xff]
  %v64 = vld [vmem:[#allocation2 + $0x30] sm:$0xff]
  %v65 = vld [vmem:[#allocation2 + $0x38] sm:$0xff]
  %v66 = vld [vmem:[#allocation2 + $0x40] sm:$0xff]
  %v67 = vld [vmem:[#allocation2 + $0x48] sm:$0xff]
  %v68 = vld [vmem:[#allocation2 + $0x50] sm:$0xff]
  %v69 = vld [vmem:[#allocation2 + $0x58] sm:$0xff]
  %v70 = vld [vmem:[#allocation2 + $0x60] sm:$0xff]
  %v71 = vld [vmem:[#allocation2 + $0x68] sm:$0xff]
  %v72 = vld [vmem:[#allocation2 + $0x70] sm:$0xff]
  %v73 = vld [vmem:[#allocation2 + $0x78] sm:$0xff]
  %v74 = vld [vmem:[%s0] sm:$0xf]
  %v75 = vld [vmem:[%s0 + $0x4] sm:$0xf]
  %v76 = vld [vmem:[%s0 + $0x8] sm:$0xf]
  %v77 = vld [vmem:[%s0 + $0xc] sm:$0xf]
  %v78 = vld [vmem:[%s0 + $0x10] sm:$0xf]
  %v79 = vld [vmem:[%s0 + $0x14] sm:$0xf]
  %v80 = vld [vmem:[%s0 + $0x18] sm:$0xf]
  %v81 = vld [vmem:[%s0 + $0x1c] sm:$0xf]
  %v82 = vld [vmem:[%s0 + $0x20] sm:$0xf]
  %v83 = vld [vmem:[%s0 + $0x24] sm:$0xf]
  %v84 = vld [vmem:[%s0 + $0x28] sm:$0xf]
  %v85 = vld [vmem:[%s0 + $0x2c] sm:$0xf]
  %v86 = vld [vmem:[%s0 + $0x30] sm:$0xf]
  %v87 = vld [vmem:[%s0 + $0x34] sm:$0xf]
  %v88 = vld [vmem:[%s0 + $0x38] sm:$0xf]
  %v89 = vld [vmem:[%s0 + $0x3c] sm:$0xf]
  %v106 = vunpack.c.l.b16 %v74
  %v107 = vunpack.c.l.b16 %v75
  %v108 = vunpack.c.l.b16 %v76
  %v109 = vunpack.c.l.b16 %v77
  %v110 = vunpack.c.l.b16 %v78
  %v111 = vunpack.c.l.b16 %v79
  %v112 = vunpack.c.l.b16 %v80
  %v113 = vunpack.c.l.b16 %v81
  %v114 = vunpack.c.l.b16 %v82
  %v115 = vunpack.c.l.b16 %v83
  %v116 = vunpack.c.l.b16 %v84
  %v117 = vunpack.c.l.b16 %v85
  %v118 = vunpack.c.l.b16 %v86
  %v119 = vunpack.c.l.b16 %v87
  %v120 = vunpack.c.l.b16 %v88
  %v121 = vunpack.c.l.b16 %v89
  %v122 = vpack.c.b16 %v107, %v106
  %v123 = vpack.c.b16 %v109, %v108
  %v124 = vpack.c.b16 %v111, %v110
  %v125 = vpack.c.b16 %v113, %v112
  %v126 = vpack.c.b16 %v115, %v114
  %v127 = vpack.c.b16 %v117, %v116
  %v128 = vpack.c.b16 %v119, %v118
  %v129 = vpack.c.b16 %v121, %v120
  %v154 = vunpack.c.l.b16 %v42
  %v155 = vunpack.c.l.b16 %v43
  %v156 = vunpack.c.l.b16 %v44
  %v157 = vunpack.c.l.b16 %v45
  %v158 = vunpack.c.l.b16 %v46
  %v159 = vunpack.c.l.b16 %v47
  %v160 = vunpack.c.l.b16 %v48
  %v161 = vunpack.c.l.b16 %v49
  %v162 = vunpack.c.l.b16 %v50
  %v163 = vunpack.c.l.b16 %v51
  %v164 = vunpack.c.l.b16 %v52
  %v165 = vunpack.c.l.b16 %v53
  %v166 = vunpack.c.l.b16 %v54
  %v167 = vunpack.c.l.b16 %v55
  %v168 = vunpack.c.l.b16 %v56
  %v169 = vunpack.c.l.b16 %v57
  %v170 = vpack.c.b16 %v155, %v154
  %v171 = vpack.c.b16 %v157, %v156
  %v172 = vpack.c.b16 %v159, %v158
  %v173 = vpack.c.b16 %v161, %v160
  %v174 = vpack.c.b16 %v163, %v162
  %v175 = vpack.c.b16 %v165, %v164
  %v176 = vpack.c.b16 %v167, %v166
  %v177 = vpack.c.b16 %v169, %v168
  %186 = vmatprep.subr.bf16.mxu0 0
  %187 = vmatpush1.bf16.msra.mxu0 %v170
  %188 = vmatprep.subr.bf16.mxu0 0
  %189 = vmatpush1.bf16.msra.mxu0 %v171
  %190 = vmatprep.subr.bf16.mxu0 0
  %191 = vmatpush1.bf16.msra.mxu0 %v172
  %192 = vmatprep.subr.bf16.mxu0 0
  %193 = vmatpush1.bf16.msra.mxu0 %v173
  %194 = vmatprep.subr.bf16.mxu0 0
  %195 = vmatpush1.bf16.msra.mxu0 %v174
  %196 = vmatprep.subr.bf16.mxu0 0
  %197 = vmatpush1.bf16.msra.mxu0 %v175
  %198 = vmatprep.subr.bf16.mxu0 0
  %199 = vmatpush1.bf16.msra.mxu0 %v176
  %200 = vmatprep.subr.bf16.mxu0 0
  %201 = vmatpush1.bf16.msra.mxu0 %v177
  %202 = vmatprep.subr.bf16.mxu0 0
  %203 = vmatpush1.bf16.msra.mxu0 0
  %204 = vmatprep.subr.bf16.mxu0 0
  %205 = vmatpush1.bf16.msra.mxu0 0
  %206 = vmatprep.subr.bf16.mxu0 0
  %207 = vmatpush1.bf16.msra.mxu0 0
  %208 = vmatprep.subr.bf16.mxu0 0
  %209 = vmatpush1.bf16.msra.mxu0 0
  %210 = vmatprep.subr.bf16.mxu0 0
  %211 = vmatpush1.bf16.msra.mxu0 0
  %212 = vmatprep.subr.bf16.mxu0 0
  %213 = vmatpush1.bf16.msra.mxu0 0
  %214 = vmatprep.subr.bf16.mxu0 0
  %215 = vmatpush1.bf16.msra.mxu0 0
  %216 = vmatprep.subr.bf16.mxu0 0
  %217 = vmatpush1.bf16.msra.mxu0 0
  %218 = vmatprep.mubr.bf16.mxu0 0
  %219 = vmatmul.mubr.bf16.gmra.mrb[0].mxu0 %v122
  %v220 = vpop.f32.mrb[0].mxu0
  %v221 = vadd.f32 0.0, %v220
  %v222 = vpop.f32.mrb[0].mxu0
  %v223 = vpop.f32.mrb[0].mxu0
  %v224 = vadd.f32 0.0, %v223
  %v225 = vpop.f32.mrb[0].mxu0
  %226 = vmatprep.mubr.bf16.mxu0 0
  %227 = vmatmul.mubr.bf16.gmra.mrb[0].mxu0 %v123
  %v228 = vpop.f32.mrb[0].mxu0
  %v229 = vadd.f32 0.0, %v228
  %v230 = vpop.f32.mrb[0].mxu0
  %v231 = vpop.f32.mrb[0].mxu0
  %v232 = vadd.f32 0.0, %v231
  %v233 = vpop.f32.mrb[0].mxu0
  %234 = vmatprep.mubr.bf16.mxu0 0
  %235 = vmatmul.mubr.bf16.gmra.mrb[0].mxu0 %v124
  %v236 = vpop.f32.mrb[0].mxu0
  %v237 = vadd.f32 0.0, %v236
  %v238 = vpop.f32.mrb[0].mxu0
  %v239 = vpop.f32.mrb[0].mxu0
  %v240 = vadd.f32 0.0, %v239
  %v241 = vpop.f32.mrb[0].mxu0
  %242 = vmatprep.mubr.bf16.mxu0 0
  %243 = vmatmul.mubr.bf16.gmra.mrb[0].mxu0 %v125
  %v244 = vpop.f32.mrb[0].mxu0
  %v245 = vadd.f32 0.0, %v244
  %v246 = vpop.f32.mrb[0].mxu0
  %v247 = vpop.f32.mrb[0].mxu0
  %v248 = vadd.f32 0.0, %v247
  %v249 = vpop.f32.mrb[0].mxu0
  %250 = vmatprep.mubr.bf16.mxu0 0
  %251 = vmatmul.mubr.bf16.gmra.mrb[0].mxu0 %v126
  %v252 = vpop.f32.mrb[0].mxu0
  %v253 = vadd.f32 0.0, %v252
  %v254 = vpop.f32.mrb[0].mxu0
  %v255 = vpop.f32.mrb[0].mxu0
  %v256 = vadd.f32 0.0, %v255
  %v257 = vpop.f32.mrb[0].mxu0
  %258 = vmatprep.mubr.bf16.mxu0 0
  %259 = vmatmul.mubr.bf16.gmra.mrb[0].mxu0 %v127
  %v260 = vpop.f32.mrb[0].mxu0
  %v261 = vadd.f32 0.0, %v260
  %v262 = vpop.f32.mrb[0].mxu0
  %v263 = vpop.f32.mrb[0].mxu0
  %v264 = vadd.f32 0.0, %v263
  %v265 = vpop.f32.mrb[0].mxu0
  %266 = vmatprep.mubr.bf16.mxu0 0
  %267 = vmatmul.mubr.bf16.gmra.mrb[0].mxu0 %v128
  %v268 = vpop.f32.mrb[0].mxu0
  %v269 = vadd.f32 0.0, %v268
  %v270 = vpop.f32.mrb[0].mxu0
  %v271 = vpop.f32.mrb[0].mxu0
  %v272 = vadd.f32 0.0, %v271
  %v273 = vpop.f32.mrb[0].mxu0
  %274 = vmatprep.mubr.bf16.mxu0 0
  %275 = vmatmul.mubr.bf16.gmra.mrb[0].mxu0 %v129
  %v276 = vpop.f32.mrb[0].mxu0
  %v277 = vadd.f32 0.0, %v276
  %v278 = vpop.f32.mrb[0].mxu0
  %v279 = vpop.f32.mrb[0].mxu0
  %v280 = vadd.f32 0.0, %v279
  %v281 = vpop.f32.mrb[0].mxu0
  %282 = vdwg.mxu0
  %v283 = vadd.f32 %v58, %v221
  %v284 = vadd.f32 %v59, %v224
  %v285 = vadd.f32 %v60, %v229
  %v286 = vadd.f32 %v61, %v232
  %v287 = vadd.f32 %v62, %v237
  %v288 = vadd.f32 %v63, %v240
  %v289 = vadd.f32 %v64, %v245
  %v290 = vadd.f32 %v65, %v248
  %v291 = vadd.f32 %v66, %v253
  %v292 = vadd.f32 %v67, %v256
  %v293 = vadd.f32 %v68, %v261
  %v294 = vadd.f32 %v69, %v264
  %v295 = vadd.f32 %v70, %v269
  %v296 = vadd.f32 %v71, %v272
  %v297 = vadd.f32 %v72, %v277
  %v298 = vadd.f32 %v73, %v280
  %299 = vst [vmem:[#allocation2] sm:$0xff] %v283
  %300 = vst [vmem:[#allocation2 + $0x8] sm:$0xff] %v284
  %301 = vst [vmem:[#allocation2 + $0x10] sm:$0xff] %v285
  %302 = vst [vmem:[#allocation2 + $0x18] sm:$0xff] %v286
  %303 = vst [vmem:[#allocation2 + $0x20] sm:$0xff] %v287
  %304 = vst [vmem:[#allocation2 + $0x28] sm:$0xff] %v288
  %305 = vst [vmem:[#allocation2 + $0x30] sm:$0xff] %v289
  %306 = vst [vmem:[#allocation2 + $0x38] sm:$0xff] %v290
  %307 = vst [vmem:[#allocation2 + $0x40] sm:$0xff] %v291
  %308 = vst [vmem:[#allocation2 + $0x48] sm:$0xff] %v292
  %309 = vst [vmem:[#allocation2 + $0x50] sm:$0xff] %v293
  %310 = vst [vmem:[#allocation2 + $0x58] sm:$0xff] %v294
  %311 = vst [vmem:[#allocation2 + $0x60] sm:$0xff] %v295
  %312 = vst [vmem:[#allocation2 + $0x68] sm:$0xff] %v296
  %313 = vst [vmem:[#allocation2 + $0x70] sm:$0xff] %v297
  %314 = vst [vmem:[#allocation2 + $0x78] sm:$0xff] %v298
  // Predicated region
  $region18: #{gcn_forward.7} parent=0 // pred_check
    %p315 = pneg %p17
  $region19: #{gcn_forward.7} parent=0 // pred_check_branch
    %317 = sbr.rel (%p315) target = $region21
  $region20: #{gcn_forward.7} parent=0 // pred_region
    %v318 = vld [vmem:[#allocation2] sm:$0xff]
    %v319 = vld [vmem:[#allocation2 + $0x8] sm:$0xff]
    %v320 = vld [vmem:[#allocation2 + $0x10] sm:$0xff]
    %v321 = vld [vmem:[#allocation2 + $0x18] sm:$0xff]
    %v322 = vld [vmem:[#allocation2 + $0x20] sm:$0xff]
    %v323 = vld [vmem:[#allocation2 + $0x28] sm:$0xff]
    %v324 = vld [vmem:[#allocation2 + $0x30] sm:$0xff]
    %v325 = vld [vmem:[#allocation2 + $0x38] sm:$0xff]
    %v326 = vld [vmem:[#allocation2 + $0x40] sm:$0xff]
    %v327 = vld [vmem:[#allocation2 + $0x48] sm:$0xff]
    %v328 = vld [vmem:[#allocation2 + $0x50] sm:$0xff]
    %v329 = vld [vmem:[#allocation2 + $0x58] sm:$0xff]
    %v330 = vld [vmem:[#allocation2 + $0x60] sm:$0xff]
    %v331 = vld [vmem:[#allocation2 + $0x68] sm:$0xff]
    %v332 = vld [vmem:[#allocation2 + $0x70] sm:$0xff]
    %v333 = vld [vmem:[#allocation2 + $0x78] sm:$0xff]
    %v334 = vld [vmem:[%s2] sm:$0x1]
    %v336 = vlaneseq
    %v337 = vshrl.u32 %v336, 7
    %v338 = vsub.s32 0, %v337
    %v339 = vrot.slane %v334, %v338
    %v341 = vadd.f32 %v318, %v339
    %v342 = vadd.f32 %v319, %v339
    %v343 = vadd.f32 %v320, %v339
    %v344 = vadd.f32 %v321, %v339
    %v345 = vadd.f32 %v322, %v339
    %v346 = vadd.f32 %v323, %v339
    %v347 = vadd.f32 %v324, %v339
    %v348 = vadd.f32 %v325, %v339
    %v349 = vadd.f32 %v326, %v339
    %v350 = vadd.f32 %v327, %v339
    %v351 = vadd.f32 %v328, %v339
    %v352 = vadd.f32 %v329, %v339
    %v353 = vadd.f32 %v330, %v339
    %v354 = vadd.f32 %v331, %v339
    %v355 = vadd.f32 %v332, %v339
    %v356 = vadd.f32 %v333, %v339
    %357 = vst [vmem:[%s3] sm:$0xff] %v341
    %358 = vst [vmem:[%s3 + $0x8] sm:$0xff] %v342
    %359 = vst [vmem:[%s3 + $0x10] sm:$0xff] %v343
    %360 = vst [vmem:[%s3 + $0x18] sm:$0xff] %v344
    %361 = vst [vmem:[%s3 + $0x20] sm:$0xff] %v345
    %362 = vst [vmem:[%s3 + $0x28] sm:$0xff] %v346
    %363 = vst [vmem:[%s3 + $0x30] sm:$0xff] %v347
    %364 = vst [vmem:[%s3 + $0x38] sm:$0xff] %v348
    %365 = vst [vmem:[%s3 + $0x40] sm:$0xff] %v349
    %366 = vst [vmem:[%s3 + $0x48] sm:$0xff] %v350
    %367 = vst [vmem:[%s3 + $0x50] sm:$0xff] %v351
    %368 = vst [vmem:[%s3 + $0x58] sm:$0xff] %v352
    %369 = vst [vmem:[%s3 + $0x60] sm:$0xff] %v353
    %370 = vst [vmem:[%s3 + $0x68] sm:$0xff] %v354
    %371 = vst [vmem:[%s3 + $0x70] sm:$0xff] %v355
    %372 = vst [vmem:[%s3 + $0x78] sm:$0xff] %v356
    %v373 = vlaneseq
    %v374 = vand.u32 %v373, 127
    %vm375 = vcmp.lt.s32.totalorder %v374, 4
    %v376 = vsel %vm375, %v341, -1e+30
    %v377 = vsel %vm375, %v342, -1e+30
    %v378 = vsel %vm375, %v343, -1e+30
    %v379 = vsel %vm375, %v344, -1e+30
    %v380 = vsel %vm375, %v345, -1e+30
    %v381 = vsel %vm375, %v346, -1e+30
    %v382 = vsel %vm375, %v347, -1e+30
    %v383 = vsel %vm375, %v348, -1e+30
    %v384 = vsel %vm375, %v349, -1e+30
    %v385 = vsel %vm375, %v350, -1e+30
    %v386 = vsel %vm375, %v351, -1e+30
    %v387 = vsel %vm375, %v352, -1e+30
    %v388 = vsel %vm375, %v353, -1e+30
    %v389 = vsel %vm375, %v354, -1e+30
    %v390 = vsel %vm375, %v355, -1e+30
    %v391 = vsel %vm375, %v356, -1e+30
    %392 = vmax.xlane.f32.xlu0 %v376
    %v393 = vpop.xlane.xlu0 %392
    %394 = vmax.xlane.f32.xlu0 %v377
    %v395 = vpop.xlane.xlu0 %394
    %396 = vmax.xlane.f32.xlu0 %v378
    %v397 = vpop.xlane.xlu0 %396
    %398 = vmax.xlane.f32.xlu0 %v379
    %v399 = vpop.xlane.xlu0 %398
    %400 = vmax.xlane.f32.xlu0 %v380
    %v401 = vpop.xlane.xlu0 %400
    %402 = vmax.xlane.f32.xlu0 %v381
    %v403 = vpop.xlane.xlu0 %402
    %404 = vmax.xlane.f32.xlu0 %v382
    %v405 = vpop.xlane.xlu0 %404
    %406 = vmax.xlane.f32.xlu0 %v383
    %v407 = vpop.xlane.xlu0 %406
    %408 = vmax.xlane.f32.xlu0 %v384
    %v409 = vpop.xlane.xlu0 %408
    %410 = vmax.xlane.f32.xlu0 %v385
    %v411 = vpop.xlane.xlu0 %410
    %412 = vmax.xlane.f32.xlu0 %v386
    %v413 = vpop.xlane.xlu0 %412
    %414 = vmax.xlane.f32.xlu0 %v387
    %v415 = vpop.xlane.xlu0 %414
    %416 = vmax.xlane.f32.xlu0 %v388
    %v417 = vpop.xlane.xlu0 %416
    %418 = vmax.xlane.f32.xlu0 %v389
    %v419 = vpop.xlane.xlu0 %418
    %420 = vmax.xlane.f32.xlu0 %v390
    %v421 = vpop.xlane.xlu0 %420
    %422 = vmax.xlane.f32.xlu0 %v391
    %v423 = vpop.xlane.xlu0 %422
    %v424 = vsub.f32 %v376, %v393
    %v425 = vsub.f32 %v377, %v395
    %v426 = vsub.f32 %v378, %v397
    %v427 = vsub.f32 %v379, %v399
    %v428 = vsub.f32 %v380, %v401
    %v429 = vsub.f32 %v381, %v403
    %v430 = vsub.f32 %v382, %v405
    %v431 = vsub.f32 %v383, %v407
    %v432 = vsub.f32 %v384, %v409
    %v433 = vsub.f32 %v385, %v411
    %v434 = vsub.f32 %v386, %v413
    %v435 = vsub.f32 %v387, %v415
    %v436 = vsub.f32 %v388, %v417
    %v437 = vsub.f32 %v389, %v419
    %v438 = vsub.f32 %v390, %v421
    %v439 = vsub.f32 %v391, %v423
    %v440 = vmul.f32 %v424, 1.442695
    %v441 = vpow.pop %v440
    %v442 = vmul.f32 %v425, 1.442695
    %v443 = vpow.pop %v442
    %v444 = vmul.f32 %v426, 1.442695
    %v445 = vpow.pop %v444
    %v446 = vmul.f32 %v427, 1.442695
    %v447 = vpow.pop %v446
    %v448 = vmul.f32 %v428, 1.442695
    %v449 = vpow.pop %v448
    %v450 = vmul.f32 %v429, 1.442695
    %v451 = vpow.pop %v450
    %v452 = vmul.f32 %v430, 1.442695
    %v453 = vpow.pop %v452
    %v454 = vmul.f32 %v431, 1.442695
    %v455 = vpow.pop %v454
    %v456 = vmul.f32 %v432, 1.442695
    %v457 = vpow.pop %v456
    %v458 = vmul.f32 %v433, 1.442695
    %v459 = vpow.pop %v458
    %v460 = vmul.f32 %v434, 1.442695
    %v461 = vpow.pop %v460
    %v462 = vmul.f32 %v435, 1.442695
    %v463 = vpow.pop %v462
    %v464 = vmul.f32 %v436, 1.442695
    %v465 = vpow.pop %v464
    %v466 = vmul.f32 %v437, 1.442695
    %v467 = vpow.pop %v466
    %v468 = vmul.f32 %v438, 1.442695
    %v469 = vpow.pop %v468
    %v470 = vmul.f32 %v439, 1.442695
    %v471 = vpow.pop %v470
    %472 = vadd.xlane.f32.xlu0 %v441
    %v473 = vpop.xlane.xlu0 %472
    %474 = vadd.xlane.f32.xlu0 %v443
    %v475 = vpop.xlane.xlu0 %474
    %476 = vadd.xlane.f32.xlu0 %v445
    %v477 = vpop.xlane.xlu0 %476
    %478 = vadd.xlane.f32.xlu0 %v447
    %v479 = vpop.xlane.xlu0 %478
    %480 = vadd.xlane.f32.xlu0 %v449
    %v481 = vpop.xlane.xlu0 %480
    %482 = vadd.xlane.f32.xlu0 %v451
    %v483 = vpop.xlane.xlu0 %482
    %484 = vadd.xlane.f32.xlu0 %v453
    %v485 = vpop.xlane.xlu0 %484
    %486 = vadd.xlane.f32.xlu0 %v455
    %v487 = vpop.xlane.xlu0 %486
    %488 = vadd.xlane.f32.xlu0 %v457
    %v489 = vpop.xlane.xlu0 %488
    %490 = vadd.xlane.f32.xlu0 %v459
    %v491 = vpop.xlane.xlu0 %490
    %492 = vadd.xlane.f32.xlu0 %v461
    %v493 = vpop.xlane.xlu0 %492
    %494 = vadd.xlane.f32.xlu0 %v463
    %v495 = vpop.xlane.xlu0 %494
    %496 = vadd.xlane.f32.xlu0 %v465
    %v497 = vpop.xlane.xlu0 %496
    %498 = vadd.xlane.f32.xlu0 %v467
    %v499 = vpop.xlane.xlu0 %498
    %500 = vadd.xlane.f32.xlu0 %v469
    %v501 = vpop.xlane.xlu0 %500
    %502 = vadd.xlane.f32.xlu0 %v471
    %v503 = vpop.xlane.xlu0 %502
    %v504 = vlog2.pop %v473
    %v505 = vmul.f32 %v504, 0.6931472
    %v506 = vlog2.pop %v475
    %v507 = vmul.f32 %v506, 0.6931472
    %v508 = vlog2.pop %v477
    %v509 = vmul.f32 %v508, 0.6931472
    %v510 = vlog2.pop %v479
    %v511 = vmul.f32 %v510, 0.6931472
    %v512 = vlog2.pop %v481
    %v513 = vmul.f32 %v512, 0.6931472
    %v514 = vlog2.pop %v483
    %v515 = vmul.f32 %v514, 0.6931472
    %v516 = vlog2.pop %v485
    %v517 = vmul.f32 %v516, 0.6931472
    %v518 = vlog2.pop %v487
    %v519 = vmul.f32 %v518, 0.6931472
    %v520 = vlog2.pop %v489
    %v521 = vmul.f32 %v520, 0.6931472
    %v522 = vlog2.pop %v491
    %v523 = vmul.f32 %v522, 0.6931472
    %v524 = vlog2.pop %v493
    %v525 = vmul.f32 %v524, 0.6931472
    %v526 = vlog2.pop %v495
    %v527 = vmul.f32 %v526, 0.6931472
    %v528 = vlog2.pop %v497
    %v529 = vmul.f32 %v528, 0.6931472
    %v530 = vlog2.pop %v499
    %v531 = vmul.f32 %v530, 0.6931472
    %v532 = vlog2.pop %v501
    %v533 = vmul.f32 %v532, 0.6931472
    %v534 = vlog2.pop %v503
    %v535 = vmul.f32 %v534, 0.6931472
    %v536 = vsub.f32 %v424, %v505
    %v537 = vsub.f32 %v425, %v507
    %v538 = vsub.f32 %v426, %v509
    %v539 = vsub.f32 %v427, %v511
    %v540 = vsub.f32 %v428, %v513
    %v541 = vsub.f32 %v429, %v515
    %v542 = vsub.f32 %v430, %v517
    %v543 = vsub.f32 %v431, %v519
    %v544 = vsub.f32 %v432, %v521
    %v545 = vsub.f32 %v433, %v523
    %v546 = vsub.f32 %v434, %v525
    %v547 = vsub.f32 %v435, %v527
    %v548 = vsub.f32 %v436, %v529
    %v549 = vsub.f32 %v437, %v531
    %v550 = vsub.f32 %v438, %v533
    %v551 = vsub.f32 %v439, %v535
    %552 = vst [vmem:[%s4] sm:$0xff] %v536
    %553 = vst [vmem:[%s4 + $0x8] sm:$0xff] %v537
    %554 = vst [vmem:[%s4 + $0x10] sm:$0xff] %v538
    %555 = vst [vmem:[%s4 + $0x18] sm:$0xff] %v539
    %556 = vst [vmem:[%s4 + $0x20] sm:$0xff] %v540
    %557 = vst [vmem:[%s4 + $0x28] sm:$0xff] %v541
    %558 = vst [vmem:[%s4 + $0x30] sm:$0xff] %v542
    %559 = vst [vmem:[%s4 + $0x38] sm:$0xff] %v543
    %560 = vst [vmem:[%s4 + $0x40] sm:$0xff] %v544
    %561 = vst [vmem:[%s4 + $0x48] sm:$0xff] %v545
    %562 = vst [vmem:[%s4 + $0x50] sm:$0xff] %v546
    %563 = vst [vmem:[%s4 + $0x58] sm:$0xff] %v547
    %564 = vst [vmem:[%s4 + $0x60] sm:$0xff] %v548
    %565 = vst [vmem:[%s4 + $0x68] sm:$0xff] %v549
    %566 = vst [vmem:[%s4 + $0x70] sm:$0xff] %v550
    %567 = vst [vmem:[%s4 + $0x78] sm:$0xff] %v551
  $region21: #{gcn_forward.7} parent=0 // pred_fallthru
    _
  // Predicated region
  $region22: #{gcn_forward.7} parent=0 // pred_check
    _
  $region23: #{gcn_forward.7} parent=0 // pred_check_branch
    %569 = sbr.rel (0) target = $region25
  $region24: #{gcn_forward.7} parent=0 // pred_region
    _
  $region25: #{gcn_forward.7} parent=0 // pred_fallthru
    _
  // Predicated region
  $region26: #{gcn_forward.7} parent=0 // pred_check
    _
  $region27: #{gcn_forward.7} parent=0 // pred_check_branch
    %571 = sbr.rel (0) target = $region29
  $region28: #{gcn_forward.7} parent=0 // pred_region
    _
  $region29: #{gcn_forward.7} parent=0 // pred_fallthru
    _
  // Predicated region
  $region30: #{gcn_forward.7} parent=0 // pred_check
    _
  $region31: #{gcn_forward.7} parent=0 // pred_check_branch
    %573 = sbr.rel (0) target = $region33
  $region32: #{gcn_forward.7} parent=0 // pred_region
    _
  $region33: #{gcn_forward.7} parent=0 // pred_fallthru
    _
  // Predicated region
  $region34: #{gcn_forward.7} parent=0 // pred_check
    _
  $region35: #{gcn_forward.7} parent=0 // pred_check_branch
    %575 = sbr.rel (0) target = $region37
  $region36: #{gcn_forward.7} parent=0 // pred_region
    _
  $region37: #{gcn_forward.7} parent=0 // pred_fallthru
    _

</llo_original>
